<compile_context>
chip_gen: v6e
topology: v6e:2x2x1
jax: 0.10.0
libtpu: 0.0.40
codegen_flags: <defaults>
</compile_context>

<pallas_src>
import functools

import jax
import jax.numpy as jnp
import numpy as np
from jax.experimental import pallas as pl


def _sigmoid(x):
    # sigmoid(x) = 0.5*(1 + tanh(x/2)): EUP tanh, no VALU divide (v5e/v6e safe).
    return 0.5 * (jnp.tanh(0.5 * x) + 1.0)


def _softmax_last(x):
    # max-subtracted softmax; denominator reciprocal goes to the EUP slot.
    m = jnp.max(x, axis=-1, keepdims=True)
    e = jnp.exp(x - m)
    return e * pl.reciprocal(jnp.sum(e, axis=-1, keepdims=True), approx=True)


# ----------------------------------------------------------------------------
# Layout of the single lane-dense (rows, 128) parameter slab.
# Every block starts at an 8-aligned row; single-row biases share the first
# aligned group.  name -> (row_offset, n_rows, n_cols).
# ----------------------------------------------------------------------------
def _slab_layout(E, H, V):
    assert H == 2 * E and 2 * H <= 128 and V <= 128, \
        "demo packing assumes 4*E <= 128 and V <= 128"
    lay = {
        "bg_r": (0, 1, 2 * H),   # [b_ir_d + b_hr_d | b_ir_p + b_hr_p]
        "bg_z": (1, 1, 2 * H),   # [b_iz_d + b_hz_d | b_iz_p + b_hz_p]
        "bg_n": (2, 1, 2 * H),   # [b_in_d          | b_in_p         ]
        "bhn":  (3, 1, 2 * H),   # [b_hn_d          | b_hn_p         ]
        "bab":  (4, 1, 2 * E),   # [beta bias | alpha bias | zeros]
        "brr":  (5, 1, H),
        "bq":   (6, 1, E),
        "bo1":  (7, 1, 2 * E),
        "bo2":  (8, 1, V),
    }
    r = 16
    for name, nr, nc in (("wab", H, 2 * E),      # [wb | wa^T | zeros]
                         ("wr", E, H),
                         ("wq", 2 * H, E),
                         ("medT", E, V),
                         ("med", V, E),
                         ("wo1", 3 * E, 2 * E),
                         ("wo2", 2 * E, V)):
        lay[name] = (r, nr, nc)
        r += nr
    total = ((r + 7) // 8) * 8
    return lay, total


# ----------------------------------------------------------------------------
# One-time, host-side parameter packing (reused across inferences).
# ----------------------------------------------------------------------------
def pack_tamsgc_params(gru_d, gru_p, wa_t, ba_t, wb_t, bb_t, wr_t, brr_t,
                       wq_t, bq_t, ehr_w, ehr_b, ddi_w, ddi_b, lam,
                       wo1_t, bo1_t, wo2_t, bo2_t):
    E = int(wb_t.shape[0])
    H = 2 * E
    V = int(ehr_w.shape[1])
    lay, total = _slab_layout(E, H, V)

    def npf(a):
        return np.asarray(a, np.float32)

    w_ih_d, b_ih_d, b_hh_d = map(npf, gru_d)
    w_ih_p, b_ih_p, b_hh_p = map(npf, gru_p)

    # fused gate weights, per-gate with modalities adjacent:
    # columns = [r_d | r_p | z_d | z_p | n_d | n_p], shape (E, 6H)
    wg_all = np.concatenate(
        [w_ih_d[0:H].T, w_ih_p[0:H].T,
         w_ih_d[H:2 * H].T, w_ih_p[H:2 * H].T,
         w_ih_d[2 * H:3 * H].T, w_ih_p[2 * H:3 * H].T], axis=1)

    slab = np.zeros((total, 128), np.float32)

    def put(name, mat):
        r0, nr, nc = lay[name]
        slab[r0:r0 + nr, 0:nc] = npf(mat).reshape(nr, nc)

    put("bg_r", np.concatenate([b_ih_d[0:H] + b_hh_d[0:H],
                                b_ih_p[0:H] + b_hh_p[0:H]]))
    put("bg_z", np.concatenate([b_ih_d[H:2 * H] + b_hh_d[H:2 * H],
                                b_ih_p[H:2 * H] + b_hh_p[H:2 * H]]))
    put("bg_n", np.concatenate([b_ih_d[2 * H:3 * H], b_ih_p[2 * H:3 * H]]))
    put("bhn", np.concatenate([b_hh_d[2 * H:3 * H], b_hh_p[2 * H:3 * H]]))

    # alpha folded into beta: one (H, 2E) matmul produces [beta | alpha_pre]
    wab = np.zeros((H, 2 * E), np.float32)
    wab[:, 0:E] = npf(wb_t).T
    wab[:, E] = npf(wa_t)[0]
    put("wab", wab)
    bab = np.zeros((2 * E,), np.float32)
    bab[0:E] = npf(bb_t)
    bab[E] = npf(ba_t)[0]
    put("bab", bab)

    put("wr", npf(wr_t).T)        # (E, H)
    put("brr", brr_t)
    put("wq", npf(wq_t).T)        # (2H, E): rows [:H]=diag, [H:]=proc
    put("bq", bq_t)

    # SGC(eye) = W.T + b ; combined medication representation (parameter-only)
    med = ((npf(ehr_w).T + npf(ehr_b)[None, :])
           - npf(lam)[0] * (npf(ddi_w).T + npf(ddi_b)[None, :]))      # (V, E)
    put("med", med)
    put("medT", med.T)            # pre-transposed: no in-kernel relayout

    put("wo1", npf(wo1_t).T)      # (3E, 2E)
    put("bo1", bo1_t)
    put("wo2", npf(wo2_t).T)      # (2E, V)
    put("bo2", bo2_t)

    return jnp.asarray(wg_all), jnp.asarray(slab), lay


# ----------------------------------------------------------------------------
# Fused TAMSGC forward kernel (single invocation, everything stays in VMEM).
# x_ref holds both modalities stacked along sublanes:
#   rows [0:tp)   = diagnosis sequence (first t rows valid, rest zero padding)
#   rows [tp:2tp) = procedure sequence (first t rows valid, rest zero padding)
# ----------------------------------------------------------------------------
def tamsgc_kernel(x_ref, wg_ref, slab_ref, *rest, t, multi, lay):
    if multi:
        hist_ref, out_ref = rest
    else:
        (out_ref,) = rest

    x = x_ref[...]                                   # (2*tp, E), zero-padded rows
    two_tp, E = x.shape
    tp = two_tp // 2
    H = 2 * E

    def blk(name):                                   # static ref slice -> load
        r0, nr, nc = lay[name]
        return slab_ref[r0:r0 + nr, 0:nc]

    # ---- fused single-step GRU (h0 = 0): ONE (2tp,E)@(E,6H) gate matmul for
    #      both modalities; row-masked lane select picks the right gate block.
    g = jnp.dot(x, wg_ref[...], preferred_element_type=jnp.float32)   # (2tp, 6H)
    gr = g[:, 0:2 * H] + blk("bg_r")                 # vreg-aligned lane slices
    gz = g[:, 2 * H:4 * H] + blk("bg_z")
    gn = g[:, 4 * H:6 * H] + blk("bg_n")
    bhn = blk("bhn")                                 # (1, 2H)

    is_diag = jax.lax.broadcasted_iota(jnp.int32, (two_tp, 1), 0) < tp
    r = _sigmoid(jnp.where(is_diag, gr[:, :H], gr[:, H:]))
    z = _sigmoid(jnp.where(is_diag, gz[:, :H], gz[:, H:]))
    n = jnp.tanh(jnp.where(is_diag, gn[:, :H], gn[:, H:])
                 + r * jnp.where(is_diag, bhn[:, :H], bhn[:, H:]))
    h = (1.0 - z) * n                                # (2tp, H) already stacked

    # ---- alpha folded into beta: one (H, 2E) matmul; col E = alpha pre-act
    ab = jnp.dot(h, blk("wab"), preferred_element_type=jnp.float32) + blk("bab")
    beta = jnp.tanh(ab[:, 0:E])                      # (2tp, E)
    apre = ab[:, E:E + 1]                            # (2tp, 1)
    alpha = apre - jnp.tanh(apre)                    # tanhshrink
    v = alpha * beta * x                             # zero on padded rows

    rout = jnp.dot(v, blk("wr"), preferred_element_type=jnp.float32) + blk("brr")
    rr = jnp.maximum(rout, 0.0)                      # (2tp, H) ReLU of query MLP

    # query: relu([d|p]) @ Wq == relu(d) @ Wq[:H] + relu(p) @ Wq[H:]  (no concat)
    wq = blk("wq")                                   # (2H, E)
    q = (jnp.dot(rr[:tp], wq[:H], preferred_element_type=jnp.float32)
         + jnp.dot(rr[tp:], wq[H:], preferred_element_type=jnp.float32)
         + blk("bq"))                                # (tp, E); rows [0:t) valid

    P = q[t - 1:t, :]                                # (1, E)
    s1 = jnp.dot(P, blk("medT"), preferred_element_type=jnp.float32)  # (1, V)
    w1 = _softmax_last(s1)
    med = blk("med")                                 # (V, E)
    R1 = jnp.dot(w1, med, preferred_element_type=jnp.float32)         # (1, E)

    if multi:
        hP = q[:t - 1, :]                            # (t-1, E)
        s2 = jax.lax.dot_general(P, hP, (((1,), (1,)), ((), ())),
                                 preferred_element_type=jnp.float32)  # (1, t-1)
        w2 = _softmax_last(s2)
        wv = jnp.dot(w2, hist_ref[...], preferred_element_type=jnp.float32)  # (1,V)
        R2 = jnp.dot(wv, med, preferred_element_type=jnp.float32)     # (1, E)
    else:
        R2 = R1

    # output MLP: relu(cat(P,R1,R2)) @ Wo1 as three split matmuls (no concat)
    wo1 = blk("wo1")                                 # (3E, 2E)
    h1 = (jnp.dot(jnp.maximum(P, 0.0), wo1[0:E],
                  preferred_element_type=jnp.float32)
          + jnp.dot(jnp.maximum(R1, 0.0), wo1[E:2 * E],
                    preferred_element_type=jnp.float32)
          + jnp.dot(jnp.maximum(R2, 0.0), wo1[2 * E:3 * E],
                    preferred_element_type=jnp.float32)
          + blk("bo1"))
    h1 = jnp.maximum(h1, 0.0)                        # (1, 2E)
    out_ref[...] = (jnp.dot(h1, blk("wo2"), preferred_element_type=jnp.float32)
                    + blk("bo2"))                    # (1, V)  lane-dense store


def tamsgc_forward(diag_seq, proc_seq, wg_all, slab, lay, hist=None):
    """Single fused pallas_call for the TAMSGC eval forward pass."""
    t, _ = diag_seq.shape
    multi = hist is not None
    V = lay["bo2"][2]

    # pad time axis to a multiple of 8 so the modality stack and the
    # rr[:tp]/rr[tp:] splits are sublane-tile aligned (padding rows are zero,
    # contribute nothing downstream and are never read back).
    tp = ((t + 7) // 8) * 8
    pad = ((0, tp - t), (0, 0))
    x_all = jnp.concatenate([jnp.pad(diag_seq, pad), jnp.pad(proc_seq, pad)],
                            axis=0)                  # (2*tp, E)

    kern = functools.partial(tamsgc_kernel, t=t, multi=multi, lay=lay)
    args = (x_all, wg_all, slab) + ((hist,) if multi else ())
    # No grid / BlockSpecs: one invocation, every operand loaded whole into
    # VMEM (total < 0.4 MiB), output is a lane-dense (1, V) tile.
    return pl.pallas_call(
        kern,
        out_shape=jax.ShapeDtypeStruct((1, V), jnp.float32),
    )(*args)


if __name__ == "__main__":
    key = jax.random.PRNGKey(0)
    keys = iter(jax.random.split(key, 64))

    def u(shape, scale=0.1):
        return jax.random.uniform(next(keys), shape, jnp.float32, -scale, scale)

    emb = 32
    H = 2 * emb
    vocab = (40, 30, 128)          # (diagnosis, procedure, medication) vocab sizes
    V = vocab[2]

    # patient: list of admissions, each [diag_codes, proc_codes, med_codes]
    patient = [
        [[3, 7, 12, 25], [1, 4, 9], [5, 17, 33, 64]],
        [[2, 8, 30], [0, 6, 11, 22], [4, 50, 90]],
        [[1, 14, 19, 27, 35], [5, 13], [7, 21, 88, 120]],
    ]
    T = len(patient)

    # ---------------- raw parameters (PyTorch layouts) ----------------
    emb0 = u((vocab[0], emb))
    emb1 = u((vocab[1], emb))

    def gru_raw():
        return u((3 * H, emb)), u((3 * H,)), u((3 * H,))   # w_ih, b_ih, b_hh

    gru0_raw = gru_raw()
    gru1_raw = gru_raw()

    wa_t = u((1, H)); ba_t = u((1,))              # alpha: Linear(2E, 1)
    wb_t = u((emb, H)); bb_t = u((emb,))          # beta:  Linear(2E, E)
    wr_t = u((H, emb)); brr_t = u((H,))           # Reain_output: Linear(E, 2E)
    wq_t = u((emb, 4 * emb)); bq_t = u((emb,))    # query: Linear(4E, E)
    ehr_w = u((emb, V)); ehr_b = u((emb,))        # SGC ehr: Linear(V, E)
    ddi_w = u((emb, V)); ddi_b = u((emb,))        # SGC ddi: Linear(V, E)
    lam = u((1,))                                 # lambda_
    wo1_t = u((2 * emb, 3 * emb)); bo1_t = u((2 * emb,))
    wo2_t = u((V, 2 * emb)); bo2_t = u((V,))

    # ------- glue: embedding lookup + mean (dropout = identity in eval) -------
    def mean_emb(table, codes):
        return jnp.mean(table[jnp.asarray(codes, jnp.int32)], axis=0)

    diag_seq = jnp.stack([mean_emb(emb0, adm[0]) for adm in patient])  # (T, E)
    proc_seq = jnp.stack([mean_emb(emb1, adm[1]) for adm in patient])  # (T, E)

    # glue: multi-hot history medication matrix (only exists when T > 1)
    hist = None
    if T > 1:
        hist_np = np.zeros((T - 1, V), np.float32)
        for idx in range(T - 1):
            hist_np[idx, patient[idx][2]] = 1.0
        hist = jnp.asarray(hist_np)

    # ------- glue: one-time parameter packing into a single lane-dense slab -------
    wg_all, slab, lay = pack_tamsgc_params(
        gru0_raw, gru1_raw, wa_t, ba_t, wb_t, bb_t, wr_t, brr_t,
        wq_t, bq_t, ehr_w, ehr_b, ddi_w, ddi_b, lam,
        wo1_t, bo1_t, wo2_t, bo2_t)

    # ---------------- fused Pallas kernel ----------------
    out = tamsgc_forward(diag_seq, proc_seq, wg_all, slab, lay, hist=hist)
    out = jax.block_until_ready(out)

    # ---------------- pure-JAX reference check ----------------
    def ref_forward():
        def enc(seq, raw):
            w_ih, b_ih, b_hh = raw
            r = jax.nn.sigmoid(seq @ w_ih[0:H].T + b_ih[0:H] + b_hh[0:H])
            z = jax.nn.sigmoid(seq @ w_ih[H:2 * H].T + b_ih[H:2 * H] + b_hh[H:2 * H])
            n = jnp.tanh(seq @ w_ih[2 * H:].T + b_ih[2 * H:] + r * b_hh[2 * H:])
            h = (1.0 - z) * n
            a = h @ wa_t.T + ba_t
            a = a - jnp.tanh(a)                   # tanhshrink
            b = jnp.tanh(h @ wb_t.T + bb_t)
            return (a * b * seq) @ wr_t.T + brr_t

        d = enc(diag_seq, gru0_raw)
        p = enc(proc_seq, gru1_raw)
        pr = jnp.concatenate([d, p], axis=-1)
        q = jnp.maximum(pr, 0.0) @ wq_t.T + bq_t
        P = q[-1:]
        med_r = (ehr_w.T + ehr_b) - lam[0] * (ddi_w.T + ddi_b)
        w1 = jax.nn.softmax(P @ med_r.T, axis=-1)
        R1 = w1 @ med_r
        if T > 1:
            hP = q[:-1]
            w2 = jax.nn.softmax(P @ hP.T, axis=-1)
            R2 = (w2 @ hist) @ med_r
        else:
            R2 = R1
        cat = jnp.concatenate([P, R1, R2], axis=-1)
        h1 = jnp.maximum(jnp.maximum(cat, 0.0) @ wo1_t.T + bo1_t, 0.0)
        return h1 @ wo2_t.T + bo2_t

    ref = ref_forward()
    assert out.shape == (1, V)
    # tolerance covers pl.reciprocal(approx=True) in the in-kernel softmaxes
    assert jnp.allclose(out, ref, rtol=1e-3, atol=1e-3), "mismatch vs reference"
    print("KERNEL_OK")
</pallas_src>

<mosaic_0001>
module attributes {stable_mosaic.version = 11 : i64} {
  func.func @tamsgc_kernel(%arg0: memref<16x32xf32, #tpu.memory_space<vmem>>, %arg1: memref<32x384xf32, #tpu.memory_space<vmem>>, %arg2: memref<560x128xf32, #tpu.memory_space<vmem>>, %arg3: memref<2x128xf32, #tpu.memory_space<vmem>>, %arg4: memref<1x128xf32, #tpu.memory_space<vmem>>) attributes {dimension_semantics = [], scalar_prefetch = 0 : i64, scratch_operands = 0 : i64, tpu.core_type = #tpu.core_type<tc>} {
    %c0 = arith.constant 0 : index
    %c0_0 = arith.constant 0 : index
    %0 = vector.load %arg0[%c0, %c0_0] : memref<16x32xf32, #tpu.memory_space<vmem>>, vector<16x32xf32>
    %c0_1 = arith.constant 0 : index
    %c0_2 = arith.constant 0 : index
    %1 = vector.load %arg1[%c0_1, %c0_2] : memref<32x384xf32, #tpu.memory_space<vmem>>, vector<32x384xf32>
    %cst = arith.constant dense<0.000000e+00> : vector<16x384xf32>
    %2 = tpu.matmul %0, %1, %cst {dimension_numbers = #tpu.dot_dimension_numbers<[1], [0], [0], [1], [0, 0, 1, 1], [], []>} : vector<16x32xf32>, vector<32x384xf32>, vector<16x384xf32> -> vector<16x384xf32>
    %3 = vector.extract_strided_slice %2 {offsets = [0, 0], sizes = [16, 128], strides = [1, 1]} : vector<16x384xf32> to vector<16x128xf32>
    %c0_3 = arith.constant 0 : index
    %c0_4 = arith.constant 0 : index
    %4 = vector.load %arg2[%c0_3, %c0_4] : memref<560x128xf32, #tpu.memory_space<vmem>>, vector<1x128xf32>
    %5 = vector.broadcast %4 : vector<1x128xf32> to vector<16x128xf32>
    %6 = arith.addf %3, %5 : vector<16x128xf32>
    %7 = vector.extract_strided_slice %2 {offsets = [0, 128], sizes = [16, 128], strides = [1, 1]} : vector<16x384xf32> to vector<16x128xf32>
    %c1 = arith.constant 1 : index
    %c0_5 = arith.constant 0 : index
    %8 = vector.load %arg2[%c1, %c0_5] : memref<560x128xf32, #tpu.memory_space<vmem>>, vector<1x128xf32>
    %9 = vector.broadcast %8 : vector<1x128xf32> to vector<16x128xf32>
    %10 = arith.addf %7, %9 : vector<16x128xf32>
    %11 = vector.extract_strided_slice %2 {offsets = [0, 256], sizes = [16, 128], strides = [1, 1]} : vector<16x384xf32> to vector<16x128xf32>
    %c2 = arith.constant 2 : index
    %c0_6 = arith.constant 0 : index
    %12 = vector.load %arg2[%c2, %c0_6] : memref<560x128xf32, #tpu.memory_space<vmem>>, vector<1x128xf32>
    %13 = vector.broadcast %12 : vector<1x128xf32> to vector<16x128xf32>
    %14 = arith.addf %11, %13 : vector<16x128xf32>
    %c3 = arith.constant 3 : index
    %c0_7 = arith.constant 0 : index
    %15 = vector.load %arg2[%c3, %c0_7] : memref<560x128xf32, #tpu.memory_space<vmem>>, vector<1x128xf32>
    %16 = tpu.iota {dimensions = array<i32: 0>} : vector<16x1xi32>
    %c8_i32 = arith.constant 8 : i32
    %17 = vector.broadcast %c8_i32 : i32 to vector<16x1xi32>
    %18 = arith.cmpi slt, %16, %17 : vector<16x1xi32>
    %19 = vector.extract_strided_slice %6 {offsets = [0, 0], sizes = [16, 64], strides = [1, 1]} : vector<16x128xf32> to vector<16x64xf32>
    %20 = vector.extract_strided_slice %6 {offsets = [0, 64], sizes = [16, 64], strides = [1, 1]} : vector<16x128xf32> to vector<16x64xf32>
    %21 = vector.shape_cast %18 : vector<16x1xi1> to vector<16x1xi1>
    %22 = vector.broadcast %21 : vector<16x1xi1> to vector<16x64xi1>
    %23 = arith.select %22, %19, %20 : vector<16x64xi1>, vector<16x64xf32>
    %cst_8 = arith.constant 5.000000e-01 : f32
    %24 = vector.broadcast %cst_8 : f32 to vector<16x64xf32>
    %25 = arith.mulf %24, %23 : vector<16x64xf32>
    %26 = math.tanh %25 : vector<16x64xf32>
    %cst_9 = arith.constant 1.000000e+00 : f32
    %27 = vector.broadcast %cst_9 : f32 to vector<16x64xf32>
    %28 = arith.addf %26, %27 : vector<16x64xf32>
    %cst_10 = arith.constant 5.000000e-01 : f32
    %29 = vector.broadcast %cst_10 : f32 to vector<16x64xf32>
    %30 = arith.mulf %29, %28 : vector<16x64xf32>
    %31 = vector.extract_strided_slice %10 {offsets = [0, 0], sizes = [16, 64], strides = [1, 1]} : vector<16x128xf32> to vector<16x64xf32>
    %32 = vector.extract_strided_slice %10 {offsets = [0, 64], sizes = [16, 64], strides = [1, 1]} : vector<16x128xf32> to vector<16x64xf32>
    %33 = vector.shape_cast %18 : vector<16x1xi1> to vector<16x1xi1>
    %34 = vector.broadcast %33 : vector<16x1xi1> to vector<16x64xi1>
    %35 = arith.select %34, %31, %32 : vector<16x64xi1>, vector<16x64xf32>
    %cst_11 = arith.constant 5.000000e-01 : f32
    %36 = vector.broadcast %cst_11 : f32 to vector<16x64xf32>
    %37 = arith.mulf %36, %35 : vector<16x64xf32>
    %38 = math.tanh %37 : vector<16x64xf32>
    %cst_12 = arith.constant 1.000000e+00 : f32
    %39 = vector.broadcast %cst_12 : f32 to vector<16x64xf32>
    %40 = arith.addf %38, %39 : vector<16x64xf32>
    %cst_13 = arith.constant 5.000000e-01 : f32
    %41 = vector.broadcast %cst_13 : f32 to vector<16x64xf32>
    %42 = arith.mulf %41, %40 : vector<16x64xf32>
    %43 = vector.extract_strided_slice %14 {offsets = [0, 0], sizes = [16, 64], strides = [1, 1]} : vector<16x128xf32> to vector<16x64xf32>
    %44 = vector.extract_strided_slice %14 {offsets = [0, 64], sizes = [16, 64], strides = [1, 1]} : vector<16x128xf32> to vector<16x64xf32>
    %45 = vector.shape_cast %18 : vector<16x1xi1> to vector<16x1xi1>
    %46 = vector.broadcast %45 : vector<16x1xi1> to vector<16x64xi1>
    %47 = arith.select %46, %43, %44 : vector<16x64xi1>, vector<16x64xf32>
    %48 = vector.extract_strided_slice %15 {offsets = [0, 0], sizes = [1, 64], strides = [1, 1]} : vector<1x128xf32> to vector<1x64xf32>
    %49 = vector.extract_strided_slice %15 {offsets = [0, 64], sizes = [1, 64], strides = [1, 1]} : vector<1x128xf32> to vector<1x64xf32>
    %50 = vector.shape_cast %18 : vector<16x1xi1> to vector<16x1xi1>
    %51 = vector.broadcast %50 : vector<16x1xi1> to vector<16x64xi1>
    %52 = vector.shape_cast %48 : vector<1x64xf32> to vector<1x64xf32>
    %53 = vector.broadcast %52 : vector<1x64xf32> to vector<16x64xf32>
    %54 = vector.shape_cast %49 : vector<1x64xf32> to vector<1x64xf32>
    %55 = vector.broadcast %54 : vector<1x64xf32> to vector<16x64xf32>
    %56 = arith.select %51, %53, %55 : vector<16x64xi1>, vector<16x64xf32>
    %57 = arith.mulf %30, %56 : vector<16x64xf32>
    %58 = arith.addf %47, %57 : vector<16x64xf32>
    %59 = math.tanh %58 : vector<16x64xf32>
    %cst_14 = arith.constant 1.000000e+00 : f32
    %60 = vector.broadcast %cst_14 : f32 to vector<16x64xf32>
    %61 = arith.subf %60, %42 : vector<16x64xf32>
    %62 = arith.mulf %61, %59 : vector<16x64xf32>
    %c16 = arith.constant 16 : index
    %c0_15 = arith.constant 0 : index
    %63 = vector.load %arg2[%c16, %c0_15] : memref<560x128xf32, #tpu.memory_space<vmem>>, vector<64x64xf32>
    %cst_16 = arith.constant dense<0.000000e+00> : vector<16x64xf32>
    %64 = tpu.matmul %62, %63, %cst_16 {dimension_numbers = #tpu.dot_dimension_numbers<[1], [0], [0], [1], [0, 0, 1, 1], [], []>} : vector<16x64xf32>, vector<64x64xf32>, vector<16x64xf32> -> vector<16x64xf32>
    %c4 = arith.constant 4 : index
    %c0_17 = arith.constant 0 : index
    %65 = vector.load %arg2[%c4, %c0_17] : memref<560x128xf32, #tpu.memory_space<vmem>>, vector<1x64xf32>
    %66 = vector.broadcast %65 : vector<1x64xf32> to vector<16x64xf32>
    %67 = arith.addf %64, %66 : vector<16x64xf32>
    %68 = vector.extract_strided_slice %67 {offsets = [0, 0], sizes = [16, 32], strides = [1, 1]} : vector<16x64xf32> to vector<16x32xf32>
    %69 = math.tanh %68 : vector<16x32xf32>
    %70 = vector.extract_strided_slice %67 {offsets = [0, 32], sizes = [16, 1], strides = [1, 1]} : vector<16x64xf32> to vector<16x1xf32>
    %71 = math.tanh %70 : vector<16x1xf32>
    %72 = arith.subf %70, %71 : vector<16x1xf32>
    %73 = vector.broadcast %72 : vector<16x1xf32> to vector<16x32xf32>
    %74 = arith.mulf %73, %69 : vector<16x32xf32>
    %75 = arith.mulf %74, %0 : vector<16x32xf32>
    %c80 = arith.constant 80 : index
    %c0_18 = arith.constant 0 : index
    %76 = vector.load %arg2[%c80, %c0_18] : memref<560x128xf32, #tpu.memory_space<vmem>>, vector<32x64xf32>
    %cst_19 = arith.constant dense<0.000000e+00> : vector<16x64xf32>
    %77 = tpu.matmul %75, %76, %cst_19 {dimension_numbers = #tpu.dot_dimension_numbers<[1], [0], [0], [1], [0, 0, 1, 1], [], []>} : vector<16x32xf32>, vector<32x64xf32>, vector<16x64xf32> -> vector<16x64xf32>
    %c5 = arith.constant 5 : index
    %c0_20 = arith.constant 0 : index
    %78 = vector.load %arg2[%c5, %c0_20] : memref<560x128xf32, #tpu.memory_space<vmem>>, vector<1x64xf32>
    %79 = vector.broadcast %78 : vector<1x64xf32> to vector<16x64xf32>
    %80 = arith.addf %77, %79 : vector<16x64xf32>
    %cst_21 = arith.constant 0.000000e+00 : f32
    %81 = vector.broadcast %cst_21 : f32 to vector<16x64xf32>
    %82 = arith.maximumf %80, %81 : vector<16x64xf32>
    %c112 = arith.constant 112 : index
    %c0_22 = arith.constant 0 : index
    %83 = vector.load %arg2[%c112, %c0_22] : memref<560x128xf32, #tpu.memory_space<vmem>>, vector<128x32xf32>
    %84 = vector.extract_strided_slice %82 {offsets = [0, 0], sizes = [8, 64], strides = [1, 1]} : vector<16x64xf32> to vector<8x64xf32>
    %85 = vector.extract_strided_slice %83 {offsets = [0, 0], sizes = [64, 32], strides = [1, 1]} : vector<128x32xf32> to vector<64x32xf32>
    %cst_23 = arith.constant dense<0.000000e+00> : vector<8x32xf32>
    %86 = tpu.matmul %84, %85, %cst_23 {dimension_numbers = #tpu.dot_dimension_numbers<[1], [0], [0], [1], [0, 0, 1, 1], [], []>} : vector<8x64xf32>, vector<64x32xf32>, vector<8x32xf32> -> vector<8x32xf32>
    %87 = vector.extract_strided_slice %82 {offsets = [8, 0], sizes = [8, 64], strides = [1, 1]} : vector<16x64xf32> to vector<8x64xf32>
    %88 = vector.extract_strided_slice %83 {offsets = [64, 0], sizes = [64, 32], strides = [1, 1]} : vector<128x32xf32> to vector<64x32xf32>
    %cst_24 = arith.constant dense<0.000000e+00> : vector<8x32xf32>
    %89 = tpu.matmul %87, %88, %cst_24 {dimension_numbers = #tpu.dot_dimension_numbers<[1], [0], [0], [1], [0, 0, 1, 1], [], []>} : vector<8x64xf32>, vector<64x32xf32>, vector<8x32xf32> -> vector<8x32xf32>
    %90 = arith.addf %86, %89 : vector<8x32xf32>
    %c6 = arith.constant 6 : index
    %c0_25 = arith.constant 0 : index
    %91 = vector.load %arg2[%c6, %c0_25] : memref<560x128xf32, #tpu.memory_space<vmem>>, vector<1x32xf32>
    %92 = vector.broadcast %91 : vector<1x32xf32> to vector<8x32xf32>
    %93 = arith.addf %90, %92 : vector<8x32xf32>
    %94 = vector.extract_strided_slice %93 {offsets = [2, 0], sizes = [1, 32], strides = [1, 1]} : vector<8x32xf32> to vector<1x32xf32>
    %c240 = arith.constant 240 : index
    %c0_26 = arith.constant 0 : index
    %95 = vector.load %arg2[%c240, %c0_26] : memref<560x128xf32, #tpu.memory_space<vmem>>, vector<32x128xf32>
    %cst_27 = arith.constant dense<0.000000e+00> : vector<1x128xf32>
    %96 = tpu.matmul %94, %95, %cst_27 {dimension_numbers = #tpu.dot_dimension_numbers<[1], [0], [0], [1], [0, 0, 1, 1], [], []>} : vector<1x32xf32>, vector<32x128xf32>, vector<1x128xf32> -> vector<1x128xf32>
    %cst_28 = arith.constant dense<0xFF800000> : vector<1xf32>
    %97 = vector.multi_reduction <maximumf>, %96, %cst_28 [1] : vector<1x128xf32> to vector<1xf32>
    %98 = vector.shape_cast %97 : vector<1xf32> to vector<1x1xf32>
    %99 = vector.broadcast %98 : vector<1x1xf32> to vector<1x128xf32>
    %100 = arith.subf %96, %99 : vector<1x128xf32>
    %101 = math.exp %100 : vector<1x128xf32>
    %cst_29 = arith.constant dense<0.000000e+00> : vector<1xf32>
    %102 = vector.multi_reduction <add>, %101, %cst_29 [1] : vector<1x128xf32> to vector<1xf32>
    %103 = vector.shape_cast %102 : vector<1xf32> to vector<1x1xf32>
    %104 = tpu.reciprocal %103 {approx = true} : vector<1x1xf32> -> vector<1x1xf32>
    %105 = vector.broadcast %104 : vector<1x1xf32> to vector<1x128xf32>
    %106 = arith.mulf %101, %105 : vector<1x128xf32>
    %c272 = arith.constant 272 : index
    %c0_30 = arith.constant 0 : index
    %107 = vector.load %arg2[%c272, %c0_30] : memref<560x128xf32, #tpu.memory_space<vmem>>, vector<128x32xf32>
    %cst_31 = arith.constant dense<0.000000e+00> : vector<1x32xf32>
    %108 = tpu.matmul %106, %107, %cst_31 {dimension_numbers = #tpu.dot_dimension_numbers<[1], [0], [0], [1], [0, 0, 1, 1], [], []>} : vector<1x128xf32>, vector<128x32xf32>, vector<1x32xf32> -> vector<1x32xf32>
    %109 = vector.extract_strided_slice %93 {offsets = [0, 0], sizes = [2, 32], strides = [1, 1]} : vector<8x32xf32> to vector<2x32xf32>
    %cst_32 = arith.constant dense<0.000000e+00> : vector<1x2xf32>
    %110 = tpu.matmul %94, %109, %cst_32 {dimension_numbers = #tpu.dot_dimension_numbers<[1], [1], [0], [0], [0, 0, 1, 0], [], []>} : vector<1x32xf32>, vector<2x32xf32>, vector<1x2xf32> -> vector<1x2xf32>
    %cst_33 = arith.constant dense<0xFF800000> : vector<1xf32>
    %111 = vector.multi_reduction <maximumf>, %110, %cst_33 [1] : vector<1x2xf32> to vector<1xf32>
    %112 = vector.shape_cast %111 : vector<1xf32> to vector<1x1xf32>
    %113 = vector.broadcast %112 : vector<1x1xf32> to vector<1x2xf32>
    %114 = arith.subf %110, %113 : vector<1x2xf32>
    %115 = math.exp %114 : vector<1x2xf32>
    %cst_34 = arith.constant dense<0.000000e+00> : vector<1xf32>
    %116 = vector.multi_reduction <add>, %115, %cst_34 [1] : vector<1x2xf32> to vector<1xf32>
    %117 = vector.shape_cast %116 : vector<1xf32> to vector<1x1xf32>
    %118 = tpu.reciprocal %117 {approx = true} : vector<1x1xf32> -> vector<1x1xf32>
    %119 = vector.broadcast %118 : vector<1x1xf32> to vector<1x2xf32>
    %120 = arith.mulf %115, %119 : vector<1x2xf32>
    %c0_35 = arith.constant 0 : index
    %c0_36 = arith.constant 0 : index
    %121 = vector.load %arg3[%c0_35, %c0_36] : memref<2x128xf32, #tpu.memory_space<vmem>>, vector<2x128xf32>
    %cst_37 = arith.constant dense<0.000000e+00> : vector<1x128xf32>
    %122 = tpu.matmul %120, %121, %cst_37 {dimension_numbers = #tpu.dot_dimension_numbers<[1], [0], [0], [1], [0, 0, 1, 1], [], []>} : vector<1x2xf32>, vector<2x128xf32>, vector<1x128xf32> -> vector<1x128xf32>
    %cst_38 = arith.constant dense<0.000000e+00> : vector<1x32xf32>
    %123 = tpu.matmul %122, %107, %cst_38 {dimension_numbers = #tpu.dot_dimension_numbers<[1], [0], [0], [1], [0, 0, 1, 1], [], []>} : vector<1x128xf32>, vector<128x32xf32>, vector<1x32xf32> -> vector<1x32xf32>
    %c400 = arith.constant 400 : index
    %c0_39 = arith.constant 0 : index
    %124 = vector.load %arg2[%c400, %c0_39] : memref<560x128xf32, #tpu.memory_space<vmem>>, vector<96x64xf32>
    %cst_40 = arith.constant 0.000000e+00 : f32
    %125 = vector.broadcast %cst_40 : f32 to vector<1x32xf32>
    %126 = arith.maximumf %94, %125 : vector<1x32xf32>
    %127 = vector.extract_strided_slice %124 {offsets = [0, 0], sizes = [32, 64], strides = [1, 1]} : vector<96x64xf32> to vector<32x64xf32>
    %cst_41 = arith.constant dense<0.000000e+00> : vector<1x64xf32>
    %128 = tpu.matmul %126, %127, %cst_41 {dimension_numbers = #tpu.dot_dimension_numbers<[1], [0], [0], [1], [0, 0, 1, 1], [], []>} : vector<1x32xf32>, vector<32x64xf32>, vector<1x64xf32> -> vector<1x64xf32>
    %cst_42 = arith.constant 0.000000e+00 : f32
    %129 = vector.broadcast %cst_42 : f32 to vector<1x32xf32>
    %130 = arith.maximumf %108, %129 : vector<1x32xf32>
    %131 = vector.extract_strided_slice %124 {offsets = [32, 0], sizes = [32, 64], strides = [1, 1]} : vector<96x64xf32> to vector<32x64xf32>
    %cst_43 = arith.constant dense<0.000000e+00> : vector<1x64xf32>
    %132 = tpu.matmul %130, %131, %cst_43 {dimension_numbers = #tpu.dot_dimension_numbers<[1], [0], [0], [1], [0, 0, 1, 1], [], []>} : vector<1x32xf32>, vector<32x64xf32>, vector<1x64xf32> -> vector<1x64xf32>
    %133 = arith.addf %128, %132 : vector<1x64xf32>
    %cst_44 = arith.constant 0.000000e+00 : f32
    %134 = vector.broadcast %cst_44 : f32 to vector<1x32xf32>
    %135 = arith.maximumf %123, %134 : vector<1x32xf32>
    %136 = vector.extract_strided_slice %124 {offsets = [64, 0], sizes = [32, 64], strides = [1, 1]} : vector<96x64xf32> to vector<32x64xf32>
    %cst_45 = arith.constant dense<0.000000e+00> : vector<1x64xf32>
    %137 = tpu.matmul %135, %136, %cst_45 {dimension_numbers = #tpu.dot_dimension_numbers<[1], [0], [0], [1], [0, 0, 1, 1], [], []>} : vector<1x32xf32>, vector<32x64xf32>, vector<1x64xf32> -> vector<1x64xf32>
    %138 = arith.addf %133, %137 : vector<1x64xf32>
    %c7 = arith.constant 7 : index
    %c0_46 = arith.constant 0 : index
    %139 = vector.load %arg2[%c7, %c0_46] : memref<560x128xf32, #tpu.memory_space<vmem>>, vector<1x64xf32>
    %140 = arith.addf %138, %139 : vector<1x64xf32>
    %cst_47 = arith.constant 0.000000e+00 : f32
    %141 = vector.broadcast %cst_47 : f32 to vector<1x64xf32>
    %142 = arith.maximumf %140, %141 : vector<1x64xf32>
    %c496 = arith.constant 496 : index
    %c0_48 = arith.constant 0 : index
    %143 = vector.load %arg2[%c496, %c0_48] : memref<560x128xf32, #tpu.memory_space<vmem>>, vector<64x128xf32>
    %cst_49 = arith.constant dense<0.000000e+00> : vector<1x128xf32>
    %144 = tpu.matmul %142, %143, %cst_49 {dimension_numbers = #tpu.dot_dimension_numbers<[1], [0], [0], [1], [0, 0, 1, 1], [], []>} : vector<1x64xf32>, vector<64x128xf32>, vector<1x128xf32> -> vector<1x128xf32>
    %c8 = arith.constant 8 : index
    %c0_50 = arith.constant 0 : index
    %145 = vector.load %arg2[%c8, %c0_50] : memref<560x128xf32, #tpu.memory_space<vmem>>, vector<1x128xf32>
    %146 = arith.addf %144, %145 : vector<1x128xf32>
    %c0_51 = arith.constant 0 : index
    %c0_52 = arith.constant 0 : index
    %147 = vector.load %arg4[%c0_51, %c0_52] : memref<1x128xf32, #tpu.memory_space<vmem>>, vector<1x128xf32>
    tpu.vector_store %arg4[%c0_51, %c0_52], %146 {strides = array<i32>} : memref<1x128xf32, #tpu.memory_space<vmem>>, vector<1x128xf32>,
    return
  }
}

</mosaic_0001>

<llo_original>
// kernel: tpu_custom_call.1
$region0: #{tpu_custom_call.1}
  #allocation0 [shape = 'u32[]', space=smem, size = 0x4, offset = 0x4, fixed_abs, tag = 'smem constant byte address 0x4 - core index']
  #allocation1 [shape = 'u32[144,128]{1,0:T(1,128)}', space=vmem, size = 0x12000, scoped, tag = 'internal scratch']
  %s0 = inlined_call_operand.hbm [shape: f32[16,32], index: 0, kind: input, shape index: {}]
  %s1 = inlined_call_operand.hbm [shape: f32[32,384], index: 1, kind: input, shape index: {}]
  %s2 = inlined_call_operand.hbm [shape: f32[560,128], index: 2, kind: input, shape index: {}]
  %s3 = inlined_call_operand.vmem [shape: f32[2,128], index: 3, kind: input, shape index: {}]
  %s4 = inlined_call_operand.hbm [shape: f32[1,128], index: 4, kind: output, shape index: {}]
  %s5 = sld [smem:[#allocation0]]
  $region38: #{tpu_custom_call.1} parent=0
    _
  %s7 = ssub.s32 1, %s5
  %s8 = scalar_select 0, %s7, %s5
  $region1: #{tpu_custom_call.1} parent=0
    #allocation2 [shape = 'u8[8192]{0}', space=vmem, size = 0x2000, scoped, tag = 'input window, operand 0, single buffered']
    #allocation3 [shape = 's32[1]{0}', space=sflag, size = 0x4, scoped, tag = 'scoped memory for tpu_custom_call.1']
    #allocation4 [shape = 's32[1]{0}', space=sflag, size = 0x4, scoped, tag = 'scoped memory for tpu_custom_call.1']
    #allocation5 [shape = 'u8[49152]{0}', space=vmem, size = 0xc000, scoped, tag = 'input window, operand 1, single buffered']
    #allocation6 [shape = 's32[1]{0}', space=sflag, size = 0x4, scoped, tag = 'scoped memory for tpu_custom_call.1']
    #allocation7 [shape = 'u8[286720]{0}', space=vmem, size = 0x46000, scoped, tag = 'input window, operand 2, single buffered']
    #allocation8 [shape = 'u8[512]{0}', space=vmem, size = 0x400, scoped, tag = 'output window, operand 0, single buffered']
    %9 = vsyncpa [#allocation3], 0
    %10 = vsyncpa [#allocation6], 0
    %11 = vsyncpa [#allocation4], 0
    // Predicated region
    $region2: #{tpu_custom_call.1} parent=1 // pred_check
      _
    $region3: #{tpu_custom_call.1} parent=1 // pred_check_branch
      %13 = sbr.rel (0) target = $region5
    $region4: #{tpu_custom_call.1} parent=1 // pred_region
      %s15 = ssub.s32 256, 256
      %16 = vsyncadd [#allocation3], %s15
      %s17 = sshll.u32 [#allocation2], 4
      %s18 = int_to_ptr.vmem [resolvable:$true] %s17
      %23 = dma.hbm_to_vmem [thread:$0]  %s0, 256, %s18, [#allocation3], 128, 128, 8
    $region5: #{tpu_custom_call.1} parent=1 // pred_fallthru
      _
    // Predicated region
    $region6: #{tpu_custom_call.1} parent=1 // pred_check
      _
    $region7: #{tpu_custom_call.1} parent=1 // pred_check_branch
      %25 = sbr.rel (0) target = $region9
    $region8: #{tpu_custom_call.1} parent=1 // pred_region
      %s27 = ssub.s32 1536, 1536
      %28 = vsyncadd [#allocation6], %s27
      %s29 = sshll.u32 [#allocation5], 4
      %s30 = int_to_ptr.vmem [resolvable:$true] %s29
      %35 = dma.hbm_to_vmem [thread:$0]  %s1, 1536, %s30, [#allocation6], 384, 384, 24
    $region9: #{tpu_custom_call.1} parent=1 // pred_fallthru
      _
    // Predicated region
    $region10: #{tpu_custom_call.1} parent=1 // pred_check
      _
    $region11: #{tpu_custom_call.1} parent=1 // pred_check_branch
      %37 = sbr.rel (0) target = $region13
    $region12: #{tpu_custom_call.1} parent=1 // pred_region
      %s39 = ssub.s32 8960, 8960
      %40 = vsyncadd [#allocation6], %s39
      %s41 = sshll.u32 [#allocation7], 4
      %s42 = int_to_ptr.vmem [resolvable:$true] %s41
      %47 = dma.hbm_to_vmem [thread:$0]  %s2, 8960, %s42, [#allocation6], 128, 128, 8
    $region13: #{tpu_custom_call.1} parent=1 // pred_fallthru
      _
    // Predicated region
    $region14: #{tpu_custom_call.1} parent=1 // pred_check
      _
    $region15: #{tpu_custom_call.1} parent=1 // pred_check_branch
      %49 = sbr.rel (0) target = $region17
    $region16: #{tpu_custom_call.1} parent=1 // pred_region
      _
    $region17: #{tpu_custom_call.1} parent=1 // pred_fallthru
      _
    // Predicated region
    $region18: #{tpu_custom_call.1} parent=1 // pred_check
      _
    $region19: #{tpu_custom_call.1} parent=1 // pred_check_branch
      %51 = sbr.rel (0) target = $region21
    $region20: #{tpu_custom_call.1} parent=1 // pred_region
      %52 = dma.done [#allocation3], 256
    $region21: #{tpu_custom_call.1} parent=1 // pred_fallthru
      _
    // Predicated region
    $region22: #{tpu_custom_call.1} parent=1 // pred_check
      _
    $region23: #{tpu_custom_call.1} parent=1 // pred_check_branch
      %54 = sbr.rel (0) target = $region25
    $region24: #{tpu_custom_call.1} parent=1 // pred_region
      %55 = dma.done [#allocation6], 1536
    $region25: #{tpu_custom_call.1} parent=1 // pred_fallthru
      _
    // Predicated region
    $region26: #{tpu_custom_call.1} parent=1 // pred_check
      _
    $region27: #{tpu_custom_call.1} parent=1 // pred_check_branch
      %57 = sbr.rel (0) target = $region29
    $region28: #{tpu_custom_call.1} parent=1 // pred_region
      %58 = dma.done [#allocation6], 8960
    $region29: #{tpu_custom_call.1} parent=1 // pred_fallthru
      _
    %v59 = vld [vmem:[#allocation2] sm:$0xff]
    %v60 = vld [vmem:[#allocation2 + $0x8] sm:$0xff]
    %v61 = vld [vmem:[#allocation5] sm:$0xff]
    %v62 = vld [vmem:[#allocation5 + $0x8] sm:$0xff]
    %v63 = vld [vmem:[#allocation5 + $0x10] sm:$0xff]
    %v64 = vld [vmem:[#allocation5 + $0x18] sm:$0xff]
    %v65 = vld [vmem:[#allocation5 + $0x20] sm:$0xff]
    %v66 = vld [vmem:[#allocation5 + $0x28] sm:$0xff]
    %v67 = vld [vmem:[#allocation5 + $0x30] sm:$0xff]
    %v68 = vld [vmem:[#allocation5 + $0x38] sm:$0xff]
    %v69 = vld [vmem:[#allocation5 + $0x40] sm:$0xff]
    %v70 = vld [vmem:[#allocation5 + $0x48] sm:$0xff]
    %v71 = vld [vmem:[#allocation5 + $0x50] sm:$0xff]
    %v72 = vld [vmem:[#allocation5 + $0x58] sm:$0xff]
    %vm73 = vcmask 261120
    %v75 = vsel %vm73, %v59, 0
    %v78 = vsel %vm73, %v60, 0
    %80 = vmatprep.subr.mxu0 0.0
    %81 = vmatpush1.msra.mxu0 0.0
    %82 = vmatprep.subr.mxu0 0.0
    %83 = vmatpush1.msra.mxu0 0.0
    %84 = vmatprep.subr.mxu0 0.0
    %85 = vmatpush1.msra.mxu0 0.0
    %86 = vmatprep.subr.mxu0 0.0
    %87 = vmatpush1.msra.mxu0 0.0
    %88 = vmatprep.subr.mxu0 0.0
    %89 = vmatpush1.msra.mxu0 0.0
    %90 = vmatprep.subr.mxu0 0.0
    %91 = vmatpush1.msra.mxu0 0.0
    %92 = vmatprep.subr.mxu0 0.0
    %93 = vmatpush1.msra.mxu0 0.0
    %94 = vmatprep.subr.mxu0 0.0
    %95 = vmatpush1.msra.mxu0 0.0
    %96 = vmatprep.subr.mxu0 0.0
    %97 = vmatpush1.msra.mxu0 0.0
    %98 = vmatprep.subr.mxu0 0.0
    %99 = vmatpush1.msra.mxu0 0.0
    %100 = vmatprep.subr.mxu0 0.0
    %101 = vmatpush1.msra.mxu0 0.0
    %102 = vmatprep.subr.mxu0 0.0
    %103 = vmatpush1.msra.mxu0 0.0
    %104 = vmatprep.subr.mxu0 %v71
    %105 = vmatpush1.msra.mxu0 %v70
    %106 = vmatprep.subr.mxu0 %v68
    %107 = vmatpush1.msra.mxu0 %v67
    %108 = vmatprep.subr.mxu0 %v65
    %109 = vmatpush1.msra.mxu0 %v64
    %110 = vmatprep.subr.mxu0 %v62
    %111 = vmatpush1.msra.mxu0 %v61
    %112 = vmatprep.subr.mxu0 0.0
    %113 = vmatpush2.msra.mxu0 0.0
    %114 = vmatprep.subr.mxu0 0.0
    %115 = vmatpush2.msra.mxu0 0.0
    %116 = vmatprep.subr.mxu0 0.0
    %117 = vmatpush2.msra.mxu0 0.0
    %118 = vmatprep.subr.mxu0 0.0
    %119 = vmatpush2.msra.mxu0 0.0
    %120 = vmatprep.subr.mxu0 0.0
    %121 = vmatpush2.msra.mxu0 0.0
    %122 = vmatprep.subr.mxu0 0.0
    %123 = vmatpush2.msra.mxu0 0.0
    %124 = vmatprep.subr.mxu0 0.0
    %125 = vmatpush2.msra.mxu0 0.0
    %126 = vmatprep.subr.mxu0 0.0
    %127 = vmatpush2.msra.mxu0 0.0
    %128 = vmatprep.subr.mxu0 0.0
    %129 = vmatpush2.msra.mxu0 0.0
    %130 = vmatprep.subr.mxu0 0.0
    %131 = vmatpush2.msra.mxu0 0.0
    %132 = vmatprep.subr.mxu0 0.0
    %133 = vmatpush2.msra.mxu0 0.0
    %134 = vmatprep.subr.mxu0 0.0
    %135 = vmatpush2.msra.mxu0 0.0
    %136 = vmatprep.subr.mxu0 0.0
    %137 = vmatpush2.msra.mxu0 0.0
    %138 = vmatprep.subr.mxu0 0.0
    %139 = vmatpush2.msra.mxu0 0.0
    %140 = vmatprep.subr.mxu0 0.0
    %141 = vmatpush2.msra.mxu0 0.0
    %142 = vmatprep.subr.mxu0 0.0
    %143 = vmatpush2.msra.mxu0 0.0
    %144 = vmatprep.mubr.f32.mxu0 0.0
    %145 = vmatmul.mubr.f32.gmra.mxu0 %v75
    %v146 = vpop.f32.mrf.mxu0
    %v147 = vadd.f32 0.0, %v146
    %v148 = vpop.f32.mrf.mxu0
    %v149 = vadd.f32 0.0, %v148
    %150 = vmatprep.mubr.f32.mxu0 0.0
    %151 = vmatmul.mubr.f32.gmra.mxu0 %v78
    %v152 = vpop.f32.mrf.mxu0
    %v153 = vadd.f32 0.0, %v152
    %v154 = vpop.f32.mrf.mxu0
    %v155 = vadd.f32 0.0, %v154
    %156 = vdwg.mxu0
    %157 = vmatprep.subr.mxu0 0.0
    %158 = vmatpush1.msra.mxu0 0.0
    %159 = vmatprep.subr.mxu0 0.0
    %160 = vmatpush1.msra.mxu0 0.0
    %161 = vmatprep.subr.mxu0 0.0
    %162 = vmatpush1.msra.mxu0 0.0
    %163 = vmatprep.subr.mxu0 0.0
    %164 = vmatpush1.msra.mxu0 0.0
    %165 = vmatprep.subr.mxu0 0.0
    %166 = vmatpush1.msra.mxu0 0.0
    %167 = vmatprep.subr.mxu0 0.0
    %168 = vmatpush1.msra.mxu0 0.0
    %169 = vmatprep.subr.mxu0 0.0
    %170 = vmatpush1.msra.mxu0 0.0
    %171 = vmatprep.subr.mxu0 0.0
    %172 = vmatpush1.msra.mxu0 0.0
    %173 = vmatprep.subr.mxu0 0.0
    %174 = vmatpush1.msra.mxu0 0.0
    %175 = vmatprep.subr.mxu0 0.0
    %176 = vmatpush1.msra.mxu0 0.0
    %177 = vmatprep.subr.mxu0 0.0
    %178 = vmatpush1.msra.mxu0 0.0
    %179 = vmatprep.subr.mxu0 0.0
    %180 = vmatpush1.msra.mxu0 0.0
    %181 = vmatprep.subr.mxu0 0.0
    %182 = vmatpush1.msra.mxu0 %v72
    %183 = vmatprep.subr.mxu0 0.0
    %184 = vmatpush1.msra.mxu0 %v69
    %185 = vmatprep.subr.mxu0 0.0
    %186 = vmatpush1.msra.mxu0 %v66
    %187 = vmatprep.subr.mxu0 0.0
    %188 = vmatpush1.msra.mxu0 %v63
    %189 = vmatprep.subr.mxu0 0.0
    %190 = vmatpush2.msra.mxu0 0.0
    %191 = vmatprep.subr.mxu0 0.0
    %192 = vmatpush2.msra.mxu0 0.0
    %193 = vmatprep.subr.mxu0 0.0
    %194 = vmatpush2.msra.mxu0 0.0
    %195 = vmatprep.subr.mxu0 0.0
    %196 = vmatpush2.msra.mxu0 0.0
    %197 = vmatprep.subr.mxu0 0.0
    %198 = vmatpush2.msra.mxu0 0.0
    %199 = vmatprep.subr.mxu0 0.0
    %200 = vmatpush2.msra.mxu0 0.0
    %201 = vmatprep.subr.mxu0 0.0
    %202 = vmatpush2.msra.mxu0 0.0
    %203 = vmatprep.subr.mxu0 0.0
    %204 = vmatpush2.msra.mxu0 0.0
    %205 = vmatprep.subr.mxu0 0.0
    %206 = vmatpush2.msra.mxu0 0.0
    %207 = vmatprep.subr.mxu0 0.0
    %208 = vmatpush2.msra.mxu0 0.0
    %209 = vmatprep.subr.mxu0 0.0
    %210 = vmatpush2.msra.mxu0 0.0
    %211 = vmatprep.subr.mxu0 0.0
    %212 = vmatpush2.msra.mxu0 0.0
    %213 = vmatprep.subr.mxu0 0.0
    %214 = vmatpush2.msra.mxu0 0.0
    %215 = vmatprep.subr.mxu0 0.0
    %216 = vmatpush2.msra.mxu0 0.0
    %217 = vmatprep.subr.mxu0 0.0
    %218 = vmatpush2.msra.mxu0 0.0
    %219 = vmatprep.subr.mxu0 0.0
    %220 = vmatpush2.msra.mxu0 0.0
    %221 = vmatprep.mubr.f32.mxu0 0.0
    %222 = vmatmul.mubr.f32.gmra.mxu0 %v75
    %v223 = vpop.f32.mrf.mxu0
    %v224 = vadd.f32 0.0, %v223
    %v225 = vpop.f32.mrf.mxu0
    %226 = vmatprep.mubr.f32.mxu0 0.0
    %227 = vmatmul.mubr.f32.gmra.mxu0 %v78
    %v228 = vpop.f32.mrf.mxu0
    %v229 = vadd.f32 0.0, %v228
    %v230 = vpop.f32.mrf.mxu0
    %231 = vdwg.mxu0
    %v232 = vld [vmem:[#allocation7] sm:$0x1]
    %v233 = vlaneseq
    %v234 = vshrl.u32 %v233, 7
    %v235 = vsub.s32 0, %v234
    %v236 = vrot.slane %v232, %v235
    %v237 = vadd.f32 %v147, %v236
    %v238 = vadd.f32 %v153, %v236
    %v239 = vld [vmem:[#allocation7 + $0x1] sm:$0x1]
    %v240 = vlaneseq
    %v241 = vshrl.u32 %v240, 7
    %v242 = vsub.s32 0, %v241
    %v243 = vrot.slane %v239, %v242
    %v244 = vadd.f32 %v149, %v243
    %v245 = vadd.f32 %v155, %v243
    %v246 = vld [vmem:[#allocation7 + $0x2] sm:$0x1]
    %v247 = vlaneseq
    %v248 = vshrl.u32 %v247, 7
    %v249 = vsub.s32 0, %v248
    %v250 = vrot.slane %v246, %v249
    %v251 = vadd.f32 %v224, %v250
    %v252 = vadd.f32 %v229, %v250
    %v253 = vld [vmem:[#allocation7 + $0x3] sm:$0x1]
    %v254 = vlaneseq
    %v255 = vshrl.u32 %v254, 7
    %v256 = vadd.s32 %v255, 8
    %vm257 = vcmp.lt.s32.totalorder %v255, 8
    %vm258 = vcmp.lt.s32.totalorder %v256, 8
    %v259 = vsel %vm257, 1, 0
    %v260 = vsel %vm258, 1, 0
    %vm261 = vcmp.eq.s32.totalorder %v259, 1
    %vm262 = vcmp.eq.s32.totalorder %v260, 1
    %265 = vrot.lane.b32.xlu0 %v237, 64
    %v266 = vpop.permute.xlu0 %265
    %267 = vrot.lane.b32.xlu0 %v238, 64
    %v268 = vpop.permute.xlu0 %267
    %v271 = vsel %vm261, %v237, %v266
    %v272 = vsel %vm262, %v238, %v268
    %v273 = vmul.f32 %v271, 0.5
    %v274 = vmul.f32 %v272, 0.5
    %v275 = vtanh.pop %v273
    %v276 = vtanh.pop %v274
    %v277 = vadd.f32 %v275, 1.0
    %v278 = vadd.f32 %v276, 1.0
    %v279 = vmul.f32 %v277, 0.5
    %v280 = vmul.f32 %v278, 0.5
    %283 = vrot.lane.b32.xlu0 %v244, 64
    %v284 = vpop.permute.xlu0 %283
    %285 = vrot.lane.b32.xlu0 %v245, 64
    %v286 = vpop.permute.xlu0 %285
    %v289 = vsel %vm261, %v244, %v284
    %v290 = vsel %vm262, %v245, %v286
    %v291 = vmul.f32 %v289, 0.5
    %v292 = vmul.f32 %v290, 0.5
    %v293 = vtanh.pop %v291
    %v294 = vtanh.pop %v292
    %v295 = vadd.f32 %v293, 1.0
    %v296 = vadd.f32 %v294, 1.0
    %v297 = vmul.f32 %v295, 0.5
    %v298 = vmul.f32 %v296, 0.5
    %301 = vrot.lane.b32.xlu0 %v251, 64
    %v302 = vpop.permute.xlu0 %301
    %303 = vrot.lane.b32.xlu0 %v252, 64
    %v304 = vpop.permute.xlu0 %303
    %v307 = vsel %vm261, %v251, %v302
    %v308 = vsel %vm262, %v252, %v304
    %v309 = vlaneseq
    %v310 = vshrl.u32 %v309, 7
    %v311 = vsub.s32 0, %v310
    %v312 = vrot.slane %v253, %v311
    %314 = vrot.lane.b32.xlu0 %v312, 64
    %v315 = vpop.permute.xlu0 %314
    %v317 = vsel %vm261, %v312, %v315
    %v318 = vsel %vm262, %v312, %v315
    %v319 = vmul.f32 %v279, %v317
    %v320 = vmul.f32 %v280, %v318
    %v321 = vadd.f32 %v307, %v319
    %v322 = vadd.f32 %v308, %v320
    %v323 = vtanh.pop %v321
    %v324 = vtanh.pop %v322
    %v325 = vsub.f32 1.0, %v297
    %v326 = vsub.f32 1.0, %v298
    %v327 = vmul.f32 %v325, %v323
    %v328 = vmul.f32 %v326, %v324
    %v329 = vld [vmem:[#allocation7 + $0x10] sm:$0xff]
    %v330 = vld [vmem:[#allocation7 + $0x18] sm:$0xff]
    %v331 = vld [vmem:[#allocation7 + $0x20] sm:$0xff]
    %v332 = vld [vmem:[#allocation7 + $0x28] sm:$0xff]
    %v333 = vld [vmem:[#allocation7 + $0x30] sm:$0xff]
    %v334 = vld [vmem:[#allocation7 + $0x38] sm:$0xff]
    %v335 = vld [vmem:[#allocation7 + $0x40] sm:$0xff]
    %v336 = vld [vmem:[#allocation7 + $0x48] sm:$0xff]
    %v337 = vld [vmem:[#allocation7 + $0x4] sm:$0x1]
    %v338 = vlaneseq
    %v339 = vshrl.u32 %v338, 7
    %v340 = vsub.s32 0, %v339
    %v341 = vrot.slane %v337, %v340
    %vm342 = vcmask 523264
    %v344 = vsel %vm342, %v327, 0
    %v347 = vsel %vm342, %v328, 0
    %349 = vmatprep.subr.mxu0 0.0
    %350 = vmatpush1.msra.mxu0 0.0
    %351 = vmatprep.subr.mxu0 0.0
    %352 = vmatpush1.msra.mxu0 0.0
    %353 = vmatprep.subr.mxu0 0.0
    %354 = vmatpush1.msra.mxu0 0.0
    %355 = vmatprep.subr.mxu0 0.0
    %356 = vmatpush1.msra.mxu0 0.0
    %357 = vmatprep.subr.mxu0 0.0
    %358 = vmatpush1.msra.mxu0 0.0
    %359 = vmatprep.subr.mxu0 0.0
    %360 = vmatpush1.msra.mxu0 0.0
    %361 = vmatprep.subr.mxu0 0.0
    %362 = vmatpush1.msra.mxu0 0.0
    %363 = vmatprep.subr.mxu0 0.0
    %364 = vmatpush1.msra.mxu0 0.0
    %365 = vmatprep.subr.mxu0 0.0
    %366 = vmatpush1.msra.mxu0 %v336
    %367 = vmatprep.subr.mxu0 0.0
    %368 = vmatpush1.msra.mxu0 %v335
    %369 = vmatprep.subr.mxu0 0.0
    %370 = vmatpush1.msra.mxu0 %v334
    %371 = vmatprep.subr.mxu0 0.0
    %372 = vmatpush1.msra.mxu0 %v333
    %373 = vmatprep.subr.mxu0 0.0
    %374 = vmatpush1.msra.mxu0 %v332
    %375 = vmatprep.subr.mxu0 0.0
    %376 = vmatpush1.msra.mxu0 %v331
    %377 = vmatprep.subr.mxu0 0.0
    %378 = vmatpush1.msra.mxu0 %v330
    %379 = vmatprep.subr.mxu0 0.0
    %380 = vmatpush1.msra.mxu0 %v329
    %381 = vmatprep.subr.mxu0 0.0
    %382 = vmatpush2.msra.mxu0 0.0
    %383 = vmatprep.subr.mxu0 0.0
    %384 = vmatpush2.msra.mxu0 0.0
    %385 = vmatprep.subr.mxu0 0.0
    %386 = vmatpush2.msra.mxu0 0.0
    %387 = vmatprep.subr.mxu0 0.0
    %388 = vmatpush2.msra.mxu0 0.0
    %389 = vmatprep.subr.mxu0 0.0
    %390 = vmatpush2.msra.mxu0 0.0
    %391 = vmatprep.subr.mxu0 0.0
    %392 = vmatpush2.msra.mxu0 0.0
    %393 = vmatprep.subr.mxu0 0.0
    %394 = vmatpush2.msra.mxu0 0.0
    %395 = vmatprep.subr.mxu0 0.0
    %396 = vmatpush2.msra.mxu0 0.0
    %397 = vmatprep.subr.mxu0 0.0
    %398 = vmatpush2.msra.mxu0 0.0
    %399 = vmatprep.subr.mxu0 0.0
    %400 = vmatpush2.msra.mxu0 0.0
    %401 = vmatprep.subr.mxu0 0.0
    %402 = vmatpush2.msra.mxu0 0.0
    %403 = vmatprep.subr.mxu0 0.0
    %404 = vmatpush2.msra.mxu0 0.0
    %405 = vmatprep.subr.mxu0 0.0
    %406 = vmatpush2.msra.mxu0 0.0
    %407 = vmatprep.subr.mxu0 0.0
    %408 = vmatpush2.msra.mxu0 0.0
    %409 = vmatprep.subr.mxu0 0.0
    %410 = vmatpush2.msra.mxu0 0.0
    %411 = vmatprep.subr.mxu0 0.0
    %412 = vmatpush2.msra.mxu0 0.0
    %413 = vmatprep.mubr.f32.mxu0 0.0
    %414 = vmatmul.mubr.f32.gmra.mxu0 %v344
    %v415 = vpop.f32.mrf.mxu0
    %v416 = vadd.f32 %v341, %v415
    %v417 = vpop.f32.mrf.mxu0
    %418 = vmatprep.mubr.f32.mxu0 0.0
    %419 = vmatmul.mubr.f32.gmra.mxu0 %v347
    %v420 = vpop.f32.mrf.mxu0
    %v421 = vadd.f32 %v341, %v420
    %v422 = vpop.f32.mrf.mxu0
    %423 = vdwg.mxu0
    %v424 = vtanh.pop %v416
    %v425 = vtanh.pop %v421
    %v426 = vsub.f32 %v416, %v424
    %v427 = vsub.f32 %v421, %v425
    %429 = vset.pattern.permute.xlu0 32
    %430 = vperm.xlu0 %429, %v426
    %v431 = vpop.permute.xlu0 %430
    %434 = vset.pattern.permute.xlu0 32
    %435 = vperm.xlu0 %434, %v427
    %v436 = vpop.permute.xlu0 %435
    %v438 = vmul.f32 %v431, %v424
    %v439 = vmul.f32 %v436, %v425
    %v440 = vmul.f32 %v438, %v59
    %v441 = vmul.f32 %v439, %v60
    %v442 = vld [vmem:[#allocation7 + $0x50] sm:$0xff]
    %v443 = vld [vmem:[#allocation7 + $0x58] sm:$0xff]
    %v444 = vld [vmem:[#allocation7 + $0x60] sm:$0xff]
    %v445 = vld [vmem:[#allocation7 + $0x68] sm:$0xff]
    %v446 = vld [vmem:[#allocation7 + $0x5] sm:$0x1]
    %v447 = vlaneseq
    %v448 = vshrl.u32 %v447, 7
    %v449 = vsub.s32 0, %v448
    %v450 = vrot.slane %v446, %v449
    %v452 = vsel %vm73, %v440, 0
    %v455 = vsel %vm73, %v441, 0
    %457 = vmatprep.subr.mxu0 0.0
    %458 = vmatpush1.msra.mxu0 0.0
    %459 = vmatprep.subr.mxu0 0.0
    %460 = vmatpush1.msra.mxu0 0.0
    %461 = vmatprep.subr.mxu0 0.0
    %462 = vmatpush1.msra.mxu0 0.0
    %463 = vmatprep.subr.mxu0 0.0
    %464 = vmatpush1.msra.mxu0 0.0
    %465 = vmatprep.subr.mxu0 0.0
    %466 = vmatpush1.msra.mxu0 0.0
    %467 = vmatprep.subr.mxu0 0.0
    %468 = vmatpush1.msra.mxu0 0.0
    %469 = vmatprep.subr.mxu0 0.0
    %470 = vmatpush1.msra.mxu0 0.0
    %471 = vmatprep.subr.mxu0 0.0
    %472 = vmatpush1.msra.mxu0 0.0
    %473 = vmatprep.subr.mxu0 0.0
    %474 = vmatpush1.msra.mxu0 0.0
    %475 = vmatprep.subr.mxu0 0.0
    %476 = vmatpush1.msra.mxu0 0.0
    %477 = vmatprep.subr.mxu0 0.0
    %478 = vmatpush1.msra.mxu0 0.0
    %479 = vmatprep.subr.mxu0 0.0
    %480 = vmatpush1.msra.mxu0 0.0
    %481 = vmatprep.subr.mxu0 0.0
    %482 = vmatpush1.msra.mxu0 %v445
    %483 = vmatprep.subr.mxu0 0.0
    %484 = vmatpush1.msra.mxu0 %v444
    %485 = vmatprep.subr.mxu0 0.0
    %486 = vmatpush1.msra.mxu0 %v443
    %487 = vmatprep.subr.mxu0 0.0
    %488 = vmatpush1.msra.mxu0 %v442
    %489 = vmatprep.subr.mxu0 0.0
    %490 = vmatpush2.msra.mxu0 0.0
    %491 = vmatprep.subr.mxu0 0.0
    %492 = vmatpush2.msra.mxu0 0.0
    %493 = vmatprep.subr.mxu0 0.0
    %494 = vmatpush2.msra.mxu0 0.0
    %495 = vmatprep.subr.mxu0 0.0
    %496 = vmatpush2.msra.mxu0 0.0
    %497 = vmatprep.subr.mxu0 0.0
    %498 = vmatpush2.msra.mxu0 0.0
    %499 = vmatprep.subr.mxu0 0.0
    %500 = vmatpush2.msra.mxu0 0.0
    %501 = vmatprep.subr.mxu0 0.0
    %502 = vmatpush2.msra.mxu0 0.0
    %503 = vmatprep.subr.mxu0 0.0
    %504 = vmatpush2.msra.mxu0 0.0
    %505 = vmatprep.subr.mxu0 0.0
    %506 = vmatpush2.msra.mxu0 0.0
    %507 = vmatprep.subr.mxu0 0.0
    %508 = vmatpush2.msra.mxu0 0.0
    %509 = vmatprep.subr.mxu0 0.0
    %510 = vmatpush2.msra.mxu0 0.0
    %511 = vmatprep.subr.mxu0 0.0
    %512 = vmatpush2.msra.mxu0 0.0
    %513 = vmatprep.subr.mxu0 0.0
    %514 = vmatpush2.msra.mxu0 0.0
    %515 = vmatprep.subr.mxu0 0.0
    %516 = vmatpush2.msra.mxu0 0.0
    %517 = vmatprep.subr.mxu0 0.0
    %518 = vmatpush2.msra.mxu0 0.0
    %519 = vmatprep.subr.mxu0 0.0
    %520 = vmatpush2.msra.mxu0 0.0
    %521 = vmatprep.mubr.f32.mxu0 0.0
    %522 = vmatmul.mubr.f32.gmra.mxu0 %v452
    %v523 = vpop.f32.mrf.mxu0
    %v524 = vadd.f32 %v450, %v523
    %v525 = vpop.f32.mrf.mxu0
    %526 = vmatprep.mubr.f32.mxu0 0.0
    %527 = vmatmul.mubr.f32.gmra.mxu0 %v455
    %v528 = vpop.f32.mrf.mxu0
    %v529 = vadd.f32 %v450, %v528
    %v530 = vpop.f32.mrf.mxu0
    %531 = vdwg.mxu0
    %v532 = vmax.f32 %v524, 0.0
    %v533 = vmax.f32 %v529, 0.0
    %v534 = vld [vmem:[#allocation7 + $0x70] sm:$0xff]
    %v535 = vld [vmem:[#allocation7 + $0x78] sm:$0xff]
    %v536 = vld [vmem:[#allocation7 + $0x80] sm:$0xff]
    %v537 = vld [vmem:[#allocation7 + $0x88] sm:$0xff]
    %v538 = vld [vmem:[#allocation7 + $0x90] sm:$0xff]
    %v539 = vld [vmem:[#allocation7 + $0x98] sm:$0xff]
    %v540 = vld [vmem:[#allocation7 + $0xa0] sm:$0xff]
    %v541 = vld [vmem:[#allocation7 + $0xa8] sm:$0xff]
    %v542 = vld [vmem:[#allocation7 + $0xb0] sm:$0xff]
    %v543 = vld [vmem:[#allocation7 + $0xb8] sm:$0xff]
    %v544 = vld [vmem:[#allocation7 + $0xc0] sm:$0xff]
    %v545 = vld [vmem:[#allocation7 + $0xc8] sm:$0xff]
    %v546 = vld [vmem:[#allocation7 + $0xd0] sm:$0xff]
    %v547 = vld [vmem:[#allocation7 + $0xd8] sm:$0xff]
    %v548 = vld [vmem:[#allocation7 + $0xe0] sm:$0xff]
    %v549 = vld [vmem:[#allocation7 + $0xe8] sm:$0xff]
    %v551 = vsel %vm342, %v533, 0
    %553 = vmatprep.subr.mxu0 0.0
    %554 = vmatpush1.msra.mxu0 0.0
    %555 = vmatprep.subr.mxu0 0.0
    %556 = vmatpush1.msra.mxu0 0.0
    %557 = vmatprep.subr.mxu0 0.0
    %558 = vmatpush1.msra.mxu0 0.0
    %559 = vmatprep.subr.mxu0 0.0
    %560 = vmatpush1.msra.mxu0 0.0
    %561 = vmatprep.subr.mxu0 0.0
    %562 = vmatpush1.msra.mxu0 0.0
    %563 = vmatprep.subr.mxu0 0.0
    %564 = vmatpush1.msra.mxu0 0.0
    %565 = vmatprep.subr.mxu0 0.0
    %566 = vmatpush1.msra.mxu0 0.0
    %567 = vmatprep.subr.mxu0 0.0
    %568 = vmatpush1.msra.mxu0 0.0
    %569 = vmatprep.subr.mxu0 0.0
    %570 = vmatpush1.msra.mxu0 %v549
    %571 = vmatprep.subr.mxu0 0.0
    %572 = vmatpush1.msra.mxu0 %v548
    %573 = vmatprep.subr.mxu0 0.0
    %574 = vmatpush1.msra.mxu0 %v547
    %575 = vmatprep.subr.mxu0 0.0
    %576 = vmatpush1.msra.mxu0 %v546
    %577 = vmatprep.subr.mxu0 0.0
    %578 = vmatpush1.msra.mxu0 %v545
    %579 = vmatprep.subr.mxu0 0.0
    %580 = vmatpush1.msra.mxu0 %v544
    %581 = vmatprep.subr.mxu0 0.0
    %582 = vmatpush1.msra.mxu0 %v543
    %583 = vmatprep.subr.mxu0 0.0
    %584 = vmatpush1.msra.mxu0 %v542
    %585 = vmatprep.subr.mxu0 0.0
    %586 = vmatpush2.msra.mxu0 0.0
    %587 = vmatprep.subr.mxu0 0.0
    %588 = vmatpush2.msra.mxu0 0.0
    %589 = vmatprep.subr.mxu0 0.0
    %590 = vmatpush2.msra.mxu0 0.0
    %591 = vmatprep.subr.mxu0 0.0
    %592 = vmatpush2.msra.mxu0 0.0
    %593 = vmatprep.subr.mxu0 0.0
    %594 = vmatpush2.msra.mxu0 0.0
    %595 = vmatprep.subr.mxu0 0.0
    %596 = vmatpush2.msra.mxu0 0.0
    %597 = vmatprep.subr.mxu0 0.0
    %598 = vmatpush2.msra.mxu0 0.0
    %599 = vmatprep.subr.mxu0 0.0
    %600 = vmatpush2.msra.mxu0 0.0
    %601 = vmatprep.subr.mxu0 0.0
    %602 = vmatpush2.msra.mxu0 0.0
    %603 = vmatprep.subr.mxu0 0.0
    %604 = vmatpush2.msra.mxu0 0.0
    %605 = vmatprep.subr.mxu0 0.0
    %606 = vmatpush2.msra.mxu0 0.0
    %607 = vmatprep.subr.mxu0 0.0
    %608 = vmatpush2.msra.mxu0 0.0
    %609 = vmatprep.subr.mxu0 0.0
    %610 = vmatpush2.msra.mxu0 0.0
    %611 = vmatprep.subr.mxu0 0.0
    %612 = vmatpush2.msra.mxu0 0.0
    %613 = vmatprep.subr.mxu0 0.0
    %614 = vmatpush2.msra.mxu0 0.0
    %615 = vmatprep.subr.mxu0 0.0
    %616 = vmatpush2.msra.mxu0 0.0
    %617 = vmatprep.mubr.f32.mxu0 0.0
    %618 = vmatmul.mubr.f32.gmra.mxu0 %v551
    %v619 = vpop.f32.mrf.mxu0
    %v620 = vadd.f32 0.0, %v619
    %v621 = vpop.f32.mrf.mxu0
    %622 = vdwg.mxu0
    %v624 = vsel %vm342, %v532, 0
    %626 = vmatprep.subr.mxu0 0.0
    %627 = vmatpush1.msra.mxu0 0.0
    %628 = vmatprep.subr.mxu0 0.0
    %629 = vmatpush1.msra.mxu0 0.0
    %630 = vmatprep.subr.mxu0 0.0
    %631 = vmatpush1.msra.mxu0 0.0
    %632 = vmatprep.subr.mxu0 0.0
    %633 = vmatpush1.msra.mxu0 0.0
    %634 = vmatprep.subr.mxu0 0.0
    %635 = vmatpush1.msra.mxu0 0.0
    %636 = vmatprep.subr.mxu0 0.0
    %637 = vmatpush1.msra.mxu0 0.0
    %638 = vmatprep.subr.mxu0 0.0
    %639 = vmatpush1.msra.mxu0 0.0
    %640 = vmatprep.subr.mxu0 0.0
    %641 = vmatpush1.msra.mxu0 0.0
    %642 = vmatprep.subr.mxu0 0.0
    %643 = vmatpush1.msra.mxu0 %v541
    %644 = vmatprep.subr.mxu0 0.0
    %645 = vmatpush1.msra.mxu0 %v540
    %646 = vmatprep.subr.mxu0 0.0
    %647 = vmatpush1.msra.mxu0 %v539
    %648 = vmatprep.subr.mxu0 0.0
    %649 = vmatpush1.msra.mxu0 %v538
    %650 = vmatprep.subr.mxu0 0.0
    %651 = vmatpush1.msra.mxu0 %v537
    %652 = vmatprep.subr.mxu0 0.0
    %653 = vmatpush1.msra.mxu0 %v536
    %654 = vmatprep.subr.mxu0 0.0
    %655 = vmatpush1.msra.mxu0 %v535
    %656 = vmatprep.subr.mxu0 0.0
    %657 = vmatpush1.msra.mxu0 %v534
    %658 = vmatprep.subr.mxu0 0.0
    %659 = vmatpush2.msra.mxu0 0.0
    %660 = vmatprep.subr.mxu0 0.0
    %661 = vmatpush2.msra.mxu0 0.0
    %662 = vmatprep.subr.mxu0 0.0
    %663 = vmatpush2.msra.mxu0 0.0
    %664 = vmatprep.subr.mxu0 0.0
    %665 = vmatpush2.msra.mxu0 0.0
    %666 = vmatprep.subr.mxu0 0.0
    %667 = vmatpush2.msra.mxu0 0.0
    %668 = vmatprep.subr.mxu0 0.0
    %669 = vmatpush2.msra.mxu0 0.0
    %670 = vmatprep.subr.mxu0 0.0
    %671 = vmatpush2.msra.mxu0 0.0
    %672 = vmatprep.subr.mxu0 0.0
    %673 = vmatpush2.msra.mxu0 0.0
    %674 = vmatprep.subr.mxu0 0.0
    %675 = vmatpush2.msra.mxu0 0.0
    %676 = vmatprep.subr.mxu0 0.0
    %677 = vmatpush2.msra.mxu0 0.0
    %678 = vmatprep.subr.mxu0 0.0
    %679 = vmatpush2.msra.mxu0 0.0
    %680 = vmatprep.subr.mxu0 0.0
    %681 = vmatpush2.msra.mxu0 0.0
    %682 = vmatprep.subr.mxu0 0.0
    %683 = vmatpush2.msra.mxu0 0.0
    %684 = vmatprep.subr.mxu0 0.0
    %685 = vmatpush2.msra.mxu0 0.0
    %686 = vmatprep.subr.mxu0 0.0
    %687 = vmatpush2.msra.mxu0 0.0
    %688 = vmatprep.subr.mxu0 0.0
    %689 = vmatpush2.msra.mxu0 0.0
    %690 = vmatprep.mubr.f32.mxu0 0.0
    %691 = vmatmul.mubr.f32.gmra.mxu0 %v624
    %v692 = vpop.f32.mrf.mxu0
    %v693 = vadd.f32 %v620, %v692
    %v694 = vpop.f32.mrf.mxu0
    %695 = vdwg.mxu0
    %v696 = vld [vmem:[#allocation7 + $0x6] sm:$0x1]
    %v697 = vlaneseq
    %v698 = vshrl.u32 %v697, 7
    %v699 = vsub.s32 0, %v698
    %v700 = vrot.slane %v696, %v699
    %v701 = vadd.f32 %v693, %v700
    %v702 = vld [vmem:[#allocation7 + $0xf0] sm:$0xff]
    %v703 = vld [vmem:[#allocation7 + $0xf8] sm:$0xff]
    %v704 = vld [vmem:[#allocation7 + $0x100] sm:$0xff]
    %v705 = vld [vmem:[#allocation7 + $0x108] sm:$0xff]
    %v707 = vrot.slane %v701, 2
    %v708 = vsel %vm73, %v707, 0
    %710 = vmatprep.subr.mxu0 0.0
    %711 = vmatpush1.msra.mxu0 0.0
    %712 = vmatprep.subr.mxu0 0.0
    %713 = vmatpush1.msra.mxu0 0.0
    %714 = vmatprep.subr.mxu0 0.0
    %715 = vmatpush1.msra.mxu0 0.0
    %716 = vmatprep.subr.mxu0 0.0
    %717 = vmatpush1.msra.mxu0 0.0
    %718 = vmatprep.subr.mxu0 0.0
    %719 = vmatpush1.msra.mxu0 0.0
    %720 = vmatprep.subr.mxu0 0.0
    %721 = vmatpush1.msra.mxu0 0.0
    %722 = vmatprep.subr.mxu0 0.0
    %723 = vmatpush1.msra.mxu0 0.0
    %724 = vmatprep.subr.mxu0 0.0
    %725 = vmatpush1.msra.mxu0 0.0
    %726 = vmatprep.subr.mxu0 0.0
    %727 = vmatpush1.msra.mxu0 0.0
    %728 = vmatprep.subr.mxu0 0.0
    %729 = vmatpush1.msra.mxu0 0.0
    %730 = vmatprep.subr.mxu0 0.0
    %731 = vmatpush1.msra.mxu0 0.0
    %732 = vmatprep.subr.mxu0 0.0
    %733 = vmatpush1.msra.mxu0 0.0
    %734 = vmatprep.subr.mxu0 0.0
    %735 = vmatpush1.msra.mxu0 %v705
    %736 = vmatprep.subr.mxu0 0.0
    %737 = vmatpush1.msra.mxu0 %v704
    %738 = vmatprep.subr.mxu0 0.0
    %739 = vmatpush1.msra.mxu0 %v703
    %740 = vmatprep.subr.mxu0 0.0
    %741 = vmatpush1.msra.mxu0 %v702
    %742 = vmatprep.subr.mxu0 0.0
    %743 = vmatpush2.msra.mxu0 0.0
    %744 = vmatprep.subr.mxu0 0.0
    %745 = vmatpush2.msra.mxu0 0.0
    %746 = vmatprep.subr.mxu0 0.0
    %747 = vmatpush2.msra.mxu0 0.0
    %748 = vmatprep.subr.mxu0 0.0
    %749 = vmatpush2.msra.mxu0 0.0
    %750 = vmatprep.subr.mxu0 0.0
    %751 = vmatpush2.msra.mxu0 0.0
    %752 = vmatprep.subr.mxu0 0.0
    %753 = vmatpush2.msra.mxu0 0.0
    %754 = vmatprep.subr.mxu0 0.0
    %755 = vmatpush2.msra.mxu0 0.0
    %756 = vmatprep.subr.mxu0 0.0
    %757 = vmatpush2.msra.mxu0 0.0
    %758 = vmatprep.subr.mxu0 0.0
    %759 = vmatpush2.msra.mxu0 0.0
    %760 = vmatprep.subr.mxu0 0.0
    %761 = vmatpush2.msra.mxu0 0.0
    %762 = vmatprep.subr.mxu0 0.0
    %763 = vmatpush2.msra.mxu0 0.0
    %764 = vmatprep.subr.mxu0 0.0
    %765 = vmatpush2.msra.mxu0 0.0
    %766 = vmatprep.subr.mxu0 0.0
    %767 = vmatpush2.msra.mxu0 0.0
    %768 = vmatprep.subr.mxu0 0.0
    %769 = vmatpush2.msra.mxu0 0.0
    %770 = vmatprep.subr.mxu0 0.0
    %771 = vmatpush2.msra.mxu0 0.0
    %772 = vmatprep.subr.mxu0 0.0
    %773 = vmatpush2.msra.mxu0 0.0
    %774 = vmatprep.mubr.f32.mxu0 0.0
    %775 = vmatmul.mubr.f32.gmra.mxu0 %v708
    %v776 = vpop.f32.mrf.mxu0
    %v777 = vadd.f32 0.0, %v776
    %v778 = vpop.f32.mrf.mxu0
    %779 = vdwg.mxu0
    %vm780 = vcmask 1040384
    %v781 = vsel %vm780, %v777, -inf
    %782 = vmax.xlane.f32.xlu0 %v781
    %v783 = vpop.xlane.xlu0 %782
    %v784 = vsub.f32 %v777, %v783
    %v785 = vmul.f32 %v784, 1.442695
    %v786 = vpow.pop %v785
    %v787 = vsel %vm780, %v786, 0.0
    %788 = vadd.xlane.f32.xlu0 %v787
    %v789 = vpop.xlane.xlu0 %788
    %v790 = vrcp.pop %v789
    %v791 = vmul.f32 %v786, %v790
    %v792 = vld [vmem:[#allocation7 + $0x110] sm:$0xff]
    %v793 = vld [vmem:[#allocation7 + $0x118] sm:$0xff]
    %v794 = vld [vmem:[#allocation7 + $0x120] sm:$0xff]
    %v795 = vld [vmem:[#allocation7 + $0x128] sm:$0xff]
    %v796 = vld [vmem:[#allocation7 + $0x130] sm:$0xff]
    %v797 = vld [vmem:[#allocation7 + $0x138] sm:$0xff]
    %v798 = vld [vmem:[#allocation7 + $0x140] sm:$0xff]
    %v799 = vld [vmem:[#allocation7 + $0x148] sm:$0xff]
    %v800 = vld [vmem:[#allocation7 + $0x150] sm:$0xff]
    %v801 = vld [vmem:[#allocation7 + $0x158] sm:$0xff]
    %v802 = vld [vmem:[#allocation7 + $0x160] sm:$0xff]
    %v803 = vld [vmem:[#allocation7 + $0x168] sm:$0xff]
    %v804 = vld [vmem:[#allocation7 + $0x170] sm:$0xff]
    %v805 = vld [vmem:[#allocation7 + $0x178] sm:$0xff]
    %v806 = vld [vmem:[#allocation7 + $0x180] sm:$0xff]
    %v807 = vld [vmem:[#allocation7 + $0x188] sm:$0xff]
    %808 = vmatprep.subr.mxu0 0.0
    %809 = vmatpush1.msra.mxu0 %v807
    %810 = vmatprep.subr.mxu0 0.0
    %811 = vmatpush1.msra.mxu0 %v806
    %812 = vmatprep.subr.mxu0 0.0
    %813 = vmatpush1.msra.mxu0 %v805
    %814 = vmatprep.subr.mxu0 0.0
    %815 = vmatpush1.msra.mxu0 %v804
    %816 = vmatprep.subr.mxu0 0.0
    %817 = vmatpush1.msra.mxu0 %v803
    %818 = vmatprep.subr.mxu0 0.0
    %819 = vmatpush1.msra.mxu0 %v802
    %820 = vmatprep.subr.mxu0 0.0
    %821 = vmatpush1.msra.mxu0 %v801
    %822 = vmatprep.subr.mxu0 0.0
    %823 = vmatpush1.msra.mxu0 %v800
    %824 = vmatprep.subr.mxu0 0.0
    %825 = vmatpush1.msra.mxu0 %v799
    %826 = vmatprep.subr.mxu0 0.0
    %827 = vmatpush1.msra.mxu0 %v798
    %828 = vmatprep.subr.mxu0 0.0
    %829 = vmatpush1.msra.mxu0 %v797
    %830 = vmatprep.subr.mxu0 0.0
    %831 = vmatpush1.msra.mxu0 %v796
    %832 = vmatprep.subr.mxu0 0.0
    %833 = vmatpush1.msra.mxu0 %v795
    %834 = vmatprep.subr.mxu0 0.0
    %835 = vmatpush1.msra.mxu0 %v794
    %836 = vmatprep.subr.mxu0 0.0
    %837 = vmatpush1.msra.mxu0 %v793
    %838 = vmatprep.subr.mxu0 0.0
    %839 = vmatpush1.msra.mxu0 %v792
    %840 = vmatprep.subr.mxu0 0.0
    %841 = vmatpush2.msra.mxu0 0.0
    %842 = vmatprep.subr.mxu0 0.0
    %843 = vmatpush2.msra.mxu0 0.0
    %844 = vmatprep.subr.mxu0 0.0
    %845 = vmatpush2.msra.mxu0 0.0
    %846 = vmatprep.subr.mxu0 0.0
    %847 = vmatpush2.msra.mxu0 0.0
    %848 = vmatprep.subr.mxu0 0.0
    %849 = vmatpush2.msra.mxu0 0.0
    %850 = vmatprep.subr.mxu0 0.0
    %851 = vmatpush2.msra.mxu0 0.0
    %852 = vmatprep.subr.mxu0 0.0
    %853 = vmatpush2.msra.mxu0 0.0
    %854 = vmatprep.subr.mxu0 0.0
    %855 = vmatpush2.msra.mxu0 0.0
    %856 = vmatprep.subr.mxu0 0.0
    %857 = vmatpush2.msra.mxu0 0.0
    %858 = vmatprep.subr.mxu0 0.0
    %859 = vmatpush2.msra.mxu0 0.0
    %860 = vmatprep.subr.mxu0 0.0
    %861 = vmatpush2.msra.mxu0 0.0
    %862 = vmatprep.subr.mxu0 0.0
    %863 = vmatpush2.msra.mxu0 0.0
    %864 = vmatprep.subr.mxu0 0.0
    %865 = vmatpush2.msra.mxu0 0.0
    %866 = vmatprep.subr.mxu0 0.0
    %867 = vmatpush2.msra.mxu0 0.0
    %868 = vmatprep.subr.mxu0 0.0
    %869 = vmatpush2.msra.mxu0 0.0
    %870 = vmatprep.subr.mxu0 0.0
    %871 = vmatpush2.msra.mxu0 0.0
    %872 = vmatprep.mubr.f32.mxu0 0.0
    %873 = vmatmul.mubr.f32.gmra.mxu0 %v791
    %v874 = vpop.f32.mrf.mxu0
    %v875 = vadd.f32 0.0, %v874
    %v876 = vpop.f32.mrf.mxu0
    %877 = vdwg.mxu0
    %v878 = vsel %vm73, %v701, 0
    %880 = vmatprep.subr.mxu0 0.0
    %881 = vmatpush1.xpose.msra.mxu0 0.0
    %882 = vmatprep.subr.mxu0 0.0
    %883 = vmatpush1.xpose.msra.mxu0 0.0
    %884 = vmatprep.subr.mxu0 0.0
    %885 = vmatpush1.xpose.msra.mxu0 0.0
    %886 = vmatprep.subr.mxu0 0.0
    %887 = vmatpush1.xpose.msra.mxu0 0.0
    %888 = vmatprep.subr.mxu0 0.0
    %889 = vmatpush1.xpose.msra.mxu0 0.0
    %890 = vmatprep.subr.mxu0 0.0
    %891 = vmatpush1.xpose.msra.mxu0 0.0
    %892 = vmatprep.subr.mxu0 0.0
    %893 = vmatpush1.xpose.msra.mxu0 0.0
    %894 = vmatprep.subr.mxu0 0.0
    %895 = vmatpush1.xpose.msra.mxu0 0.0
    %896 = vmatprep.subr.mxu0 0.0
    %897 = vmatpush1.xpose.msra.mxu0 0.0
    %898 = vmatprep.subr.mxu0 0.0
    %899 = vmatpush1.xpose.msra.mxu0 0.0
    %900 = vmatprep.subr.mxu0 0.0
    %901 = vmatpush1.xpose.msra.mxu0 0.0
    %902 = vmatprep.subr.mxu0 0.0
    %903 = vmatpush1.xpose.msra.mxu0 0.0
    %904 = vmatprep.subr.mxu0 0.0
    %905 = vmatpush1.xpose.msra.mxu0 0.0
    %906 = vmatprep.subr.mxu0 0.0
    %907 = vmatpush1.xpose.msra.mxu0 0.0
    %908 = vmatprep.subr.mxu0 0.0
    %909 = vmatpush1.xpose.msra.mxu0 0.0
    %910 = vmatprep.subr.mxu0 0.0
    %911 = vmatpush1.xpose.msra.mxu0 %v878
    %912 = vmatprep.subr.mxu0 0.0
    %913 = vmatpush2.xpose.msra.mxu0 0.0
    %914 = vmatprep.subr.mxu0 0.0
    %915 = vmatpush2.xpose.msra.mxu0 0.0
    %916 = vmatprep.subr.mxu0 0.0
    %917 = vmatpush2.xpose.msra.mxu0 0.0
    %918 = vmatprep.subr.mxu0 0.0
    %919 = vmatpush2.xpose.msra.mxu0 0.0
    %920 = vmatprep.subr.mxu0 0.0
    %921 = vmatpush2.xpose.msra.mxu0 0.0
    %922 = vmatprep.subr.mxu0 0.0
    %923 = vmatpush2.xpose.msra.mxu0 0.0
    %924 = vmatprep.subr.mxu0 0.0
    %925 = vmatpush2.xpose.msra.mxu0 0.0
    %926 = vmatprep.subr.mxu0 0.0
    %927 = vmatpush2.xpose.msra.mxu0 0.0
    %928 = vmatprep.subr.mxu0 0.0
    %929 = vmatpush2.xpose.msra.mxu0 0.0
    %930 = vmatprep.subr.mxu0 0.0
    %931 = vmatpush2.xpose.msra.mxu0 0.0
    %932 = vmatprep.subr.mxu0 0.0
    %933 = vmatpush2.xpose.msra.mxu0 0.0
    %934 = vmatprep.subr.mxu0 0.0
    %935 = vmatpush2.xpose.msra.mxu0 0.0
    %936 = vmatprep.subr.mxu0 0.0
    %937 = vmatpush2.xpose.msra.mxu0 0.0
    %938 = vmatprep.subr.mxu0 0.0
    %939 = vmatpush2.xpose.msra.mxu0 0.0
    %940 = vmatprep.subr.mxu0 0.0
    %941 = vmatpush2.xpose.msra.mxu0 0.0
    %942 = vmatprep.subr.mxu0 0.0
    %943 = vmatpush2.xpose.msra.mxu0 0.0
    %944 = vmatprep.mubr.f32.mxu0 0.0
    %945 = vmatmul.mubr.f32.gmra.mxu0 %v708
    %v946 = vpop.f32.mrf.mxu0
    %v947 = vadd.f32 0.0, %v946
    %v948 = vpop.f32.mrf.mxu0
    %949 = vdwg.mxu0
    %vm950 = vcmask 8192
    %v951 = vsel %vm950, %v947, -inf
    %952 = vmax.xlane.f32.xlu0 %v951
    %v953 = vpop.xlane.xlu0 %952
    %v954 = vsub.f32 %v947, %v953
    %v955 = vmul.f32 %v954, 1.442695
    %v956 = vpow.pop %v955
    %v957 = vsel %vm950, %v956, 0.0
    %958 = vadd.xlane.f32.xlu0 %v957
    %v959 = vpop.xlane.xlu0 %958
    %v960 = vrcp.pop %v959
    %v961 = vmul.f32 %v956, %v960
    %v962 = vld [vmem:[%s3] sm:$0x3]
    %vm963 = vcmask 15360
    %v965 = vsel %vm963, %v961, 0
    %vm967 = vcmask 1041408
    %v969 = vsel %vm967, %v962, 0
    %971 = vmatprep.subr.mxu0 0.0
    %972 = vmatpush1.msra.mxu0 0.0
    %973 = vmatprep.subr.mxu0 0.0
    %974 = vmatpush1.msra.mxu0 0.0
    %975 = vmatprep.subr.mxu0 0.0
    %976 = vmatpush1.msra.mxu0 0.0
    %977 = vmatprep.subr.mxu0 0.0
    %978 = vmatpush1.msra.mxu0 0.0
    %979 = vmatprep.subr.mxu0 0.0
    %980 = vmatpush1.msra.mxu0 0.0
    %981 = vmatprep.subr.mxu0 0.0
    %982 = vmatpush1.msra.mxu0 0.0
    %983 = vmatprep.subr.mxu0 0.0
    %984 = vmatpush1.msra.mxu0 0.0
    %985 = vmatprep.subr.mxu0 0.0
    %986 = vmatpush1.msra.mxu0 0.0
    %987 = vmatprep.subr.mxu0 0.0
    %988 = vmatpush1.msra.mxu0 0.0
    %989 = vmatprep.subr.mxu0 0.0
    %990 = vmatpush1.msra.mxu0 0.0
    %991 = vmatprep.subr.mxu0 0.0
    %992 = vmatpush1.msra.mxu0 0.0
    %993 = vmatprep.subr.mxu0 0.0
    %994 = vmatpush1.msra.mxu0 0.0
    %995 = vmatprep.subr.mxu0 0.0
    %996 = vmatpush1.msra.mxu0 0.0
    %997 = vmatprep.subr.mxu0 0.0
    %998 = vmatpush1.msra.mxu0 0.0
    %999 = vmatprep.subr.mxu0 0.0
    %1000 = vmatpush1.msra.mxu0 0.0
    %1001 = vmatprep.subr.mxu0 0.0
    %1002 = vmatpush1.msra.mxu0 %v969
    %1003 = vmatprep.subr.mxu0 0.0
    %1004 = vmatpush2.msra.mxu0 0.0
    %1005 = vmatprep.subr.mxu0 0.0
    %1006 = vmatpush2.msra.mxu0 0.0
    %1007 = vmatprep.subr.mxu0 0.0
    %1008 = vmatpush2.msra.mxu0 0.0
    %1009 = vmatprep.subr.mxu0 0.0
    %1010 = vmatpush2.msra.mxu0 0.0
    %1011 = vmatprep.subr.mxu0 0.0
    %1012 = vmatpush2.msra.mxu0 0.0
    %1013 = vmatprep.subr.mxu0 0.0
    %1014 = vmatpush2.msra.mxu0 0.0
    %1015 = vmatprep.subr.mxu0 0.0
    %1016 = vmatpush2.msra.mxu0 0.0
    %1017 = vmatprep.subr.mxu0 0.0
    %1018 = vmatpush2.msra.mxu0 0.0
    %1019 = vmatprep.subr.mxu0 0.0
    %1020 = vmatpush2.msra.mxu0 0.0
    %1021 = vmatprep.subr.mxu0 0.0
    %1022 = vmatpush2.msra.mxu0 0.0
    %1023 = vmatprep.subr.mxu0 0.0
    %1024 = vmatpush2.msra.mxu0 0.0
    %1025 = vmatprep.subr.mxu0 0.0
    %1026 = vmatpush2.msra.mxu0 0.0
    %1027 = vmatprep.subr.mxu0 0.0
    %1028 = vmatpush2.msra.mxu0 0.0
    %1029 = vmatprep.subr.mxu0 0.0
    %1030 = vmatpush2.msra.mxu0 0.0
    %1031 = vmatprep.subr.mxu0 0.0
    %1032 = vmatpush2.msra.mxu0 0.0
    %1033 = vmatprep.subr.mxu0 0.0
    %1034 = vmatpush2.msra.mxu0 0.0
    %1035 = vmatprep.mubr.f32.mxu0 0.0
    %1036 = vmatmul.mubr.f32.gmra.mxu0 %v965
    %v1037 = vpop.f32.mrf.mxu0
    %v1038 = vadd.f32 0.0, %v1037
    %v1039 = vpop.f32.mrf.mxu0
    %1040 = vdwg.mxu0
    %1041 = vmatprep.subr.mxu0 0.0
    %1042 = vmatpush1.msra.mxu0 %v807
    %1043 = vmatprep.subr.mxu0 0.0
    %1044 = vmatpush1.msra.mxu0 %v806
    %1045 = vmatprep.subr.mxu0 0.0
    %1046 = vmatpush1.msra.mxu0 %v805
    %1047 = vmatprep.subr.mxu0 0.0
    %1048 = vmatpush1.msra.mxu0 %v804
    %1049 = vmatprep.subr.mxu0 0.0
    %1050 = vmatpush1.msra.mxu0 %v803
    %1051 = vmatprep.subr.mxu0 0.0
    %1052 = vmatpush1.msra.mxu0 %v802
    %1053 = vmatprep.subr.mxu0 0.0
    %1054 = vmatpush1.msra.mxu0 %v801
    %1055 = vmatprep.subr.mxu0 0.0
    %1056 = vmatpush1.msra.mxu0 %v800
    %1057 = vmatprep.subr.mxu0 0.0
    %1058 = vmatpush1.msra.mxu0 %v799
    %1059 = vmatprep.subr.mxu0 0.0
    %1060 = vmatpush1.msra.mxu0 %v798
    %1061 = vmatprep.subr.mxu0 0.0
    %1062 = vmatpush1.msra.mxu0 %v797
    %1063 = vmatprep.subr.mxu0 0.0
    %1064 = vmatpush1.msra.mxu0 %v796
    %1065 = vmatprep.subr.mxu0 0.0
    %1066 = vmatpush1.msra.mxu0 %v795
    %1067 = vmatprep.subr.mxu0 0.0
    %1068 = vmatpush1.msra.mxu0 %v794
    %1069 = vmatprep.subr.mxu0 0.0
    %1070 = vmatpush1.msra.mxu0 %v793
    %1071 = vmatprep.subr.mxu0 0.0
    %1072 = vmatpush1.msra.mxu0 %v792
    %1073 = vmatprep.subr.mxu0 0.0
    %1074 = vmatpush2.msra.mxu0 0.0
    %1075 = vmatprep.subr.mxu0 0.0
    %1076 = vmatpush2.msra.mxu0 0.0
    %1077 = vmatprep.subr.mxu0 0.0
    %1078 = vmatpush2.msra.mxu0 0.0
    %1079 = vmatprep.subr.mxu0 0.0
    %1080 = vmatpush2.msra.mxu0 0.0
    %1081 = vmatprep.subr.mxu0 0.0
    %1082 = vmatpush2.msra.mxu0 0.0
    %1083 = vmatprep.subr.mxu0 0.0
    %1084 = vmatpush2.msra.mxu0 0.0
    %1085 = vmatprep.subr.mxu0 0.0
    %1086 = vmatpush2.msra.mxu0 0.0
    %1087 = vmatprep.subr.mxu0 0.0
    %1088 = vmatpush2.msra.mxu0 0.0
    %1089 = vmatprep.subr.mxu0 0.0
    %1090 = vmatpush2.msra.mxu0 0.0
    %1091 = vmatprep.subr.mxu0 0.0
    %1092 = vmatpush2.msra.mxu0 0.0
    %1093 = vmatprep.subr.mxu0 0.0
    %1094 = vmatpush2.msra.mxu0 0.0
    %1095 = vmatprep.subr.mxu0 0.0
    %1096 = vmatpush2.msra.mxu0 0.0
    %1097 = vmatprep.subr.mxu0 0.0
    %1098 = vmatpush2.msra.mxu0 0.0
    %1099 = vmatprep.subr.mxu0 0.0
    %1100 = vmatpush2.msra.mxu0 0.0
    %1101 = vmatprep.subr.mxu0 0.0
    %1102 = vmatpush2.msra.mxu0 0.0
    %1103 = vmatprep.subr.mxu0 0.0
    %1104 = vmatpush2.msra.mxu0 0.0
    %1105 = vmatprep.mubr.f32.mxu0 0.0
    %1106 = vmatmul.mubr.f32.gmra.mxu0 %v1038
    %v1107 = vpop.f32.mrf.mxu0
    %v1108 = vadd.f32 0.0, %v1107
    %v1109 = vpop.f32.mrf.mxu0
    %1110 = vdwg.mxu0
    %v1111 = vld [vmem:[#allocation7 + $0x190] sm:$0xff]
    %v1112 = vld [vmem:[#allocation7 + $0x198] sm:$0xff]
    %v1113 = vld [vmem:[#allocation7 + $0x1a0] sm:$0xff]
    %v1114 = vld [vmem:[#allocation7 + $0x1a8] sm:$0xff]
    %v1115 = vld [vmem:[#allocation7 + $0x1b0] sm:$0xff]
    %v1116 = vld [vmem:[#allocation7 + $0x1b8] sm:$0xff]
    %v1117 = vld [vmem:[#allocation7 + $0x1c0] sm:$0xff]
    %v1118 = vld [vmem:[#allocation7 + $0x1c8] sm:$0xff]
    %v1119 = vld [vmem:[#allocation7 + $0x1d0] sm:$0xff]
    %v1120 = vld [vmem:[#allocation7 + $0x1d8] sm:$0xff]
    %v1121 = vld [vmem:[#allocation7 + $0x1e0] sm:$0xff]
    %v1122 = vld [vmem:[#allocation7 + $0x1e8] sm:$0xff]
    %v1123 = vmax.f32 %v701, 0.0
    %v1124 = vmax.f32 %v875, 0.0
    %v1126 = vsel %vm73, %v1124, 0
    %1128 = vmatprep.subr.mxu0 0.0
    %1129 = vmatpush1.msra.mxu0 0.0
    %1130 = vmatprep.subr.mxu0 0.0
    %1131 = vmatpush1.msra.mxu0 0.0
    %1132 = vmatprep.subr.mxu0 0.0
    %1133 = vmatpush1.msra.mxu0 0.0
    %1134 = vmatprep.subr.mxu0 0.0
    %1135 = vmatpush1.msra.mxu0 0.0
    %1136 = vmatprep.subr.mxu0 0.0
    %1137 = vmatpush1.msra.mxu0 0.0
    %1138 = vmatprep.subr.mxu0 0.0
    %1139 = vmatpush1.msra.mxu0 0.0
    %1140 = vmatprep.subr.mxu0 0.0
    %1141 = vmatpush1.msra.mxu0 0.0
    %1142 = vmatprep.subr.mxu0 0.0
    %1143 = vmatpush1.msra.mxu0 0.0
    %1144 = vmatprep.subr.mxu0 0.0
    %1145 = vmatpush1.msra.mxu0 0.0
    %1146 = vmatprep.subr.mxu0 0.0
    %1147 = vmatpush1.msra.mxu0 0.0
    %1148 = vmatprep.subr.mxu0 0.0
    %1149 = vmatpush1.msra.mxu0 0.0
    %1150 = vmatprep.subr.mxu0 0.0
    %1151 = vmatpush1.msra.mxu0 0.0
    %1152 = vmatprep.subr.mxu0 0.0
    %1153 = vmatpush1.msra.mxu0 %v1118
    %1154 = vmatprep.subr.mxu0 0.0
    %1155 = vmatpush1.msra.mxu0 %v1117
    %1156 = vmatprep.subr.mxu0 0.0
    %1157 = vmatpush1.msra.mxu0 %v1116
    %1158 = vmatprep.subr.mxu0 0.0
    %1159 = vmatpush1.msra.mxu0 %v1115
    %1160 = vmatprep.subr.mxu0 0.0
    %1161 = vmatpush2.msra.mxu0 0.0
    %1162 = vmatprep.subr.mxu0 0.0
    %1163 = vmatpush2.msra.mxu0 0.0
    %1164 = vmatprep.subr.mxu0 0.0
    %1165 = vmatpush2.msra.mxu0 0.0
    %1166 = vmatprep.subr.mxu0 0.0
    %1167 = vmatpush2.msra.mxu0 0.0
    %1168 = vmatprep.subr.mxu0 0.0
    %1169 = vmatpush2.msra.mxu0 0.0
    %1170 = vmatprep.subr.mxu0 0.0
    %1171 = vmatpush2.msra.mxu0 0.0
    %1172 = vmatprep.subr.mxu0 0.0
    %1173 = vmatpush2.msra.mxu0 0.0
    %1174 = vmatprep.subr.mxu0 0.0
    %1175 = vmatpush2.msra.mxu0 0.0
    %1176 = vmatprep.subr.mxu0 0.0
    %1177 = vmatpush2.msra.mxu0 0.0
    %1178 = vmatprep.subr.mxu0 0.0
    %1179 = vmatpush2.msra.mxu0 0.0
    %1180 = vmatprep.subr.mxu0 0.0
    %1181 = vmatpush2.msra.mxu0 0.0
    %1182 = vmatprep.subr.mxu0 0.0
    %1183 = vmatpush2.msra.mxu0 0.0
    %1184 = vmatprep.subr.mxu0 0.0
    %1185 = vmatpush2.msra.mxu0 0.0
    %1186 = vmatprep.subr.mxu0 0.0
    %1187 = vmatpush2.msra.mxu0 0.0
    %1188 = vmatprep.subr.mxu0 0.0
    %1189 = vmatpush2.msra.mxu0 0.0
    %1190 = vmatprep.subr.mxu0 0.0
    %1191 = vmatpush2.msra.mxu0 0.0
    %1192 = vmatprep.mubr.f32.mxu0 0.0
    %1193 = vmatmul.mubr.f32.gmra.mxu0 %v1126
    %v1194 = vpop.f32.mrf.mxu0
    %v1195 = vadd.f32 0.0, %v1194
    %v1196 = vpop.f32.mrf.mxu0
    %1197 = vdwg.mxu0
    %v1199 = vrot.slane %v1123, 2
    %v1200 = vsel %vm73, %v1199, 0
    %1202 = vmatprep.subr.mxu0 0.0
    %1203 = vmatpush1.msra.mxu0 0.0
    %1204 = vmatprep.subr.mxu0 0.0
    %1205 = vmatpush1.msra.mxu0 0.0
    %1206 = vmatprep.subr.mxu0 0.0
    %1207 = vmatpush1.msra.mxu0 0.0
    %1208 = vmatprep.subr.mxu0 0.0
    %1209 = vmatpush1.msra.mxu0 0.0
    %1210 = vmatprep.subr.mxu0 0.0
    %1211 = vmatpush1.msra.mxu0 0.0
    %1212 = vmatprep.subr.mxu0 0.0
    %1213 = vmatpush1.msra.mxu0 0.0
    %1214 = vmatprep.subr.mxu0 0.0
    %1215 = vmatpush1.msra.mxu0 0.0
    %1216 = vmatprep.subr.mxu0 0.0
    %1217 = vmatpush1.msra.mxu0 0.0
    %1218 = vmatprep.subr.mxu0 0.0
    %1219 = vmatpush1.msra.mxu0 0.0
    %1220 = vmatprep.subr.mxu0 0.0
    %1221 = vmatpush1.msra.mxu0 0.0
    %1222 = vmatprep.subr.mxu0 0.0
    %1223 = vmatpush1.msra.mxu0 0.0
    %1224 = vmatprep.subr.mxu0 0.0
    %1225 = vmatpush1.msra.mxu0 0.0
    %1226 = vmatprep.subr.mxu0 0.0
    %1227 = vmatpush1.msra.mxu0 %v1114
    %1228 = vmatprep.subr.mxu0 0.0
    %1229 = vmatpush1.msra.mxu0 %v1113
    %1230 = vmatprep.subr.mxu0 0.0
    %1231 = vmatpush1.msra.mxu0 %v1112
    %1232 = vmatprep.subr.mxu0 0.0
    %1233 = vmatpush1.msra.mxu0 %v1111
    %1234 = vmatprep.subr.mxu0 0.0
    %1235 = vmatpush2.msra.mxu0 0.0
    %1236 = vmatprep.subr.mxu0 0.0
    %1237 = vmatpush2.msra.mxu0 0.0
    %1238 = vmatprep.subr.mxu0 0.0
    %1239 = vmatpush2.msra.mxu0 0.0
    %1240 = vmatprep.subr.mxu0 0.0
    %1241 = vmatpush2.msra.mxu0 0.0
    %1242 = vmatprep.subr.mxu0 0.0
    %1243 = vmatpush2.msra.mxu0 0.0
    %1244 = vmatprep.subr.mxu0 0.0
    %1245 = vmatpush2.msra.mxu0 0.0
    %1246 = vmatprep.subr.mxu0 0.0
    %1247 = vmatpush2.msra.mxu0 0.0
    %1248 = vmatprep.subr.mxu0 0.0
    %1249 = vmatpush2.msra.mxu0 0.0
    %1250 = vmatprep.subr.mxu0 0.0
    %1251 = vmatpush2.msra.mxu0 0.0
    %1252 = vmatprep.subr.mxu0 0.0
    %1253 = vmatpush2.msra.mxu0 0.0
    %1254 = vmatprep.subr.mxu0 0.0
    %1255 = vmatpush2.msra.mxu0 0.0
    %1256 = vmatprep.subr.mxu0 0.0
    %1257 = vmatpush2.msra.mxu0 0.0
    %1258 = vmatprep.subr.mxu0 0.0
    %1259 = vmatpush2.msra.mxu0 0.0
    %1260 = vmatprep.subr.mxu0 0.0
    %1261 = vmatpush2.msra.mxu0 0.0
    %1262 = vmatprep.subr.mxu0 0.0
    %1263 = vmatpush2.msra.mxu0 0.0
    %1264 = vmatprep.subr.mxu0 0.0
    %1265 = vmatpush2.msra.mxu0 0.0
    %1266 = vmatprep.mubr.f32.mxu0 0.0
    %1267 = vmatmul.mubr.f32.gmra.mxu0 %v1200
    %v1268 = vpop.f32.mrf.mxu0
    %v1269 = vadd.f32 %v1195, %v1268
    %v1270 = vpop.f32.mrf.mxu0
    %1271 = vdwg.mxu0
    %v1272 = vmax.f32 %v1108, 0.0
    %v1274 = vsel %vm73, %v1272, 0
    %1276 = vmatprep.subr.mxu0 0.0
    %1277 = vmatpush1.msra.mxu0 0.0
    %1278 = vmatprep.subr.mxu0 0.0
    %1279 = vmatpush1.msra.mxu0 0.0
    %1280 = vmatprep.subr.mxu0 0.0
    %1281 = vmatpush1.msra.mxu0 0.0
    %1282 = vmatprep.subr.mxu0 0.0
    %1283 = vmatpush1.msra.mxu0 0.0
    %1284 = vmatprep.subr.mxu0 0.0
    %1285 = vmatpush1.msra.mxu0 0.0
    %1286 = vmatprep.subr.mxu0 0.0
    %1287 = vmatpush1.msra.mxu0 0.0
    %1288 = vmatprep.subr.mxu0 0.0
    %1289 = vmatpush1.msra.mxu0 0.0
    %1290 = vmatprep.subr.mxu0 0.0
    %1291 = vmatpush1.msra.mxu0 0.0
    %1292 = vmatprep.subr.mxu0 0.0
    %1293 = vmatpush1.msra.mxu0 0.0
    %1294 = vmatprep.subr.mxu0 0.0
    %1295 = vmatpush1.msra.mxu0 0.0
    %1296 = vmatprep.subr.mxu0 0.0
    %1297 = vmatpush1.msra.mxu0 0.0
    %1298 = vmatprep.subr.mxu0 0.0
    %1299 = vmatpush1.msra.mxu0 0.0
    %1300 = vmatprep.subr.mxu0 0.0
    %1301 = vmatpush1.msra.mxu0 %v1122
    %1302 = vmatprep.subr.mxu0 0.0
    %1303 = vmatpush1.msra.mxu0 %v1121
    %1304 = vmatprep.subr.mxu0 0.0
    %1305 = vmatpush1.msra.mxu0 %v1120
    %1306 = vmatprep.subr.mxu0 0.0
    %1307 = vmatpush1.msra.mxu0 %v1119
    %1308 = vmatprep.subr.mxu0 0.0
    %1309 = vmatpush2.msra.mxu0 0.0
    %1310 = vmatprep.subr.mxu0 0.0
    %1311 = vmatpush2.msra.mxu0 0.0
    %1312 = vmatprep.subr.mxu0 0.0
    %1313 = vmatpush2.msra.mxu0 0.0
    %1314 = vmatprep.subr.mxu0 0.0
    %1315 = vmatpush2.msra.mxu0 0.0
    %1316 = vmatprep.subr.mxu0 0.0
    %1317 = vmatpush2.msra.mxu0 0.0
    %1318 = vmatprep.subr.mxu0 0.0
    %1319 = vmatpush2.msra.mxu0 0.0
    %1320 = vmatprep.subr.mxu0 0.0
    %1321 = vmatpush2.msra.mxu0 0.0
    %1322 = vmatprep.subr.mxu0 0.0
    %1323 = vmatpush2.msra.mxu0 0.0
    %1324 = vmatprep.subr.mxu0 0.0
    %1325 = vmatpush2.msra.mxu0 0.0
    %1326 = vmatprep.subr.mxu0 0.0
    %1327 = vmatpush2.msra.mxu0 0.0
    %1328 = vmatprep.subr.mxu0 0.0
    %1329 = vmatpush2.msra.mxu0 0.0
    %1330 = vmatprep.subr.mxu0 0.0
    %1331 = vmatpush2.msra.mxu0 0.0
    %1332 = vmatprep.subr.mxu0 0.0
    %1333 = vmatpush2.msra.mxu0 0.0
    %1334 = vmatprep.subr.mxu0 0.0
    %1335 = vmatpush2.msra.mxu0 0.0
    %1336 = vmatprep.subr.mxu0 0.0
    %1337 = vmatpush2.msra.mxu0 0.0
    %1338 = vmatprep.subr.mxu0 0.0
    %1339 = vmatpush2.msra.mxu0 0.0
    %1340 = vmatprep.mubr.f32.mxu0 0.0
    %1341 = vmatmul.mubr.f32.gmra.mxu0 %v1274
    %v1342 = vpop.f32.mrf.mxu0
    %v1343 = vadd.f32 0.0, %v1342
    %v1344 = vpop.f32.mrf.mxu0
    %1345 = vdwg.mxu0
    %v1346 = vadd.f32 %v1269, %v1343
    %v1347 = vld [vmem:[#allocation7 + $0x7] sm:$0x1]
    %v1348 = vadd.f32 %v1346, %v1347
    %v1349 = vmax.f32 %v1348, 0.0
    %v1350 = vld [vmem:[#allocation7 + $0x1f0] sm:$0xff]
    %v1351 = vld [vmem:[#allocation7 + $0x1f8] sm:$0xff]
    %v1352 = vld [vmem:[#allocation7 + $0x200] sm:$0xff]
    %v1353 = vld [vmem:[#allocation7 + $0x208] sm:$0xff]
    %v1354 = vld [vmem:[#allocation7 + $0x210] sm:$0xff]
    %v1355 = vld [vmem:[#allocation7 + $0x218] sm:$0xff]
    %v1356 = vld [vmem:[#allocation7 + $0x220] sm:$0xff]
    %v1357 = vld [vmem:[#allocation7 + $0x228] sm:$0xff]
    %v1358 = vld [vmem:[#allocation7 + $0x8] sm:$0x1]
    %v1360 = vsel %vm342, %v1349, 0
    %1362 = vmatprep.subr.mxu0 0.0
    %1363 = vmatpush1.msra.mxu0 0.0
    %1364 = vmatprep.subr.mxu0 0.0
    %1365 = vmatpush1.msra.mxu0 0.0
    %1366 = vmatprep.subr.mxu0 0.0
    %1367 = vmatpush1.msra.mxu0 0.0
    %1368 = vmatprep.subr.mxu0 0.0
    %1369 = vmatpush1.msra.mxu0 0.0
    %1370 = vmatprep.subr.mxu0 0.0
    %1371 = vmatpush1.msra.mxu0 0.0
    %1372 = vmatprep.subr.mxu0 0.0
    %1373 = vmatpush1.msra.mxu0 0.0
    %1374 = vmatprep.subr.mxu0 0.0
    %1375 = vmatpush1.msra.mxu0 0.0
    %1376 = vmatprep.subr.mxu0 0.0
    %1377 = vmatpush1.msra.mxu0 0.0
    %1378 = vmatprep.subr.mxu0 0.0
    %1379 = vmatpush1.msra.mxu0 %v1357
    %1380 = vmatprep.subr.mxu0 0.0
    %1381 = vmatpush1.msra.mxu0 %v1356
    %1382 = vmatprep.subr.mxu0 0.0
    %1383 = vmatpush1.msra.mxu0 %v1355
    %1384 = vmatprep.subr.mxu0 0.0
    %1385 = vmatpush1.msra.mxu0 %v1354
    %1386 = vmatprep.subr.mxu0 0.0
    %1387 = vmatpush1.msra.mxu0 %v1353
    %1388 = vmatprep.subr.mxu0 0.0
    %1389 = vmatpush1.msra.mxu0 %v1352
    %1390 = vmatprep.subr.mxu0 0.0
    %1391 = vmatpush1.msra.mxu0 %v1351
    %1392 = vmatprep.subr.mxu0 0.0
    %1393 = vmatpush1.msra.mxu0 %v1350
    %1394 = vmatprep.subr.mxu0 0.0
    %1395 = vmatpush2.msra.mxu0 0.0
    %1396 = vmatprep.subr.mxu0 0.0
    %1397 = vmatpush2.msra.mxu0 0.0
    %1398 = vmatprep.subr.mxu0 0.0
    %1399 = vmatpush2.msra.mxu0 0.0
    %1400 = vmatprep.subr.mxu0 0.0
    %1401 = vmatpush2.msra.mxu0 0.0
    %1402 = vmatprep.subr.mxu0 0.0
    %1403 = vmatpush2.msra.mxu0 0.0
    %1404 = vmatprep.subr.mxu0 0.0
    %1405 = vmatpush2.msra.mxu0 0.0
    %1406 = vmatprep.subr.mxu0 0.0
    %1407 = vmatpush2.msra.mxu0 0.0
    %1408 = vmatprep.subr.mxu0 0.0
    %1409 = vmatpush2.msra.mxu0 0.0
    %1410 = vmatprep.subr.mxu0 0.0
    %1411 = vmatpush2.msra.mxu0 0.0
    %1412 = vmatprep.subr.mxu0 0.0
    %1413 = vmatpush2.msra.mxu0 0.0
    %1414 = vmatprep.subr.mxu0 0.0
    %1415 = vmatpush2.msra.mxu0 0.0
    %1416 = vmatprep.subr.mxu0 0.0
    %1417 = vmatpush2.msra.mxu0 0.0
    %1418 = vmatprep.subr.mxu0 0.0
    %1419 = vmatpush2.msra.mxu0 0.0
    %1420 = vmatprep.subr.mxu0 0.0
    %1421 = vmatpush2.msra.mxu0 0.0
    %1422 = vmatprep.subr.mxu0 0.0
    %1423 = vmatpush2.msra.mxu0 0.0
    %1424 = vmatprep.subr.mxu0 0.0
    %1425 = vmatpush2.msra.mxu0 0.0
    %1426 = vmatprep.mubr.f32.mxu0 0.0
    %1427 = vmatmul.mubr.f32.gmra.mxu0 %v1360
    %v1428 = vpop.f32.mrf.mxu0
    %v1429 = vadd.f32 %v1358, %v1428
    %v1430 = vpop.f32.mrf.mxu0
    %1431 = vdwg.mxu0
    %1432 = vst [vmem:[#allocation8] sm:$0x1] %v1429
    // Predicated region
    $region30: #{tpu_custom_call.1} parent=1 // pred_check
      _
    $region31: #{tpu_custom_call.1} parent=1 // pred_check_branch
      %1434 = sbr.rel (0) target = $region33
    $region32: #{tpu_custom_call.1} parent=1 // pred_region
      %s1436 = ssub.s32 16, 16
      %1437 = vsyncadd [#allocation4], %s1436
      %s1439 = sshll.u32 [#allocation8], 4
      %s1440 = int_to_ptr.vmem [resolvable:$true] %s1439
      %1442 = dma.vmem_to_hbm [thread:$0]  %s1440, 16, %s4, [#allocation4]
    $region33: #{tpu_custom_call.1} parent=1 // pred_fallthru
      _
    // Predicated region
    $region34: #{tpu_custom_call.1} parent=1 // pred_check
      _
    $region35: #{tpu_custom_call.1} parent=1 // pred_check_branch
      %1444 = sbr.rel (0) target = $region37
    $region36: #{tpu_custom_call.1} parent=1 // pred_region
      %1445 = dma.done [#allocation4], 16
    $region37: #{tpu_custom_call.1} parent=1 // pred_fallthru
      _
    %1446 = vsyncpa [#allocation3], 1
    %1447 = vsyncpa [#allocation6], 1
    %1448 = vsyncpa [#allocation4], 1

</llo_original>
